<compile_context>
chip_gen: v7x
topology: tpu7x:2x2x1
jax: 0.10.0
libtpu: 0.0.40
codegen_flags: <defaults>
</compile_context>

<pallas_src>
import numpy as np

import jax
import jax.numpy as jnp
from jax.experimental import pallas as pl
from jax.experimental.pallas import tpu as pltpu


# ----------------------------- host-side helpers -----------------------------

def _nearest_map(dst_size, src_size):
    """PyTorch F.interpolate(mode='nearest') source-index rule (float scale)."""
    scale = np.float32(src_size) / np.float32(dst_size)
    idx = np.floor(np.arange(dst_size, dtype=np.float32) * scale).astype(np.int64)
    return np.clip(idx, 0, src_size - 1)


def _sublane(dtype):
    """Sublane multiple for a dtype: 8 for f32, 16 for bf16, 32 for int8."""
    return max(8, 32 // jnp.dtype(dtype).itemsize)


def _round_up(x, m):
    return -(-int(x) // int(m)) * int(m)


def _padded_bytes(lead, sub, lane, dtype):
    """VMEM footprint of a (lead, sub, lane) buffer incl. (sublane,128) padding."""
    return (int(lead)
            * _round_up(max(int(sub), 1), _sublane(dtype))
            * _round_up(max(int(lane), 1), 128)
            * jnp.dtype(dtype).itemsize)


def _vmem_budgets():
    """(per-step working-set budget, vmem_limit_bytes) from the actual chip."""
    phys = 64 * 1024 * 1024        # conservative default (v7x per-core VMEM)
    try:
        info = pltpu.get_tpu_info()
        phys = int(getattr(info, "vmem_capacity_bytes", phys)) or phys
    except Exception:
        pass
    budget = min(phys * 3 // 8, 48 * 1024 * 1024)   # ~24 MiB (64 MiB chips) / 48 MiB
    limit = min(phys // 2, 64 * 1024 * 1024)        # ~32 MiB (64 MiB chips) / 64 MiB
    return budget, limit


def _pick_channel_tile(N, C, H, W, plans, tgt_dtype, budget, min_steps=8):
    """Largest channel tile whose padding-aware working set fits the budget,
    preferring tiles that keep >= min_steps grid steps for pipelining/megacore."""
    HW = H * W
    sub = max([_sublane(tgt_dtype)] + [_sublane(p["dtype"]) for p in plans] + [8])

    def working_set(tc):
        b = 0
        b += 2 * 2 * _padded_bytes(1, tc, HW, tgt_dtype)        # target + out, dbl-buffered
        b += _padded_bytes(1, tc, HW, jnp.float32)              # f32 accumulator scratch
        for p in plans:
            if p["resize"]:
                lane = p["rh"] * W if p["uniform"] else W
                b += 2 * _padded_bytes(tc, p["hs"], p["ws"], p["dtype"])            # src block
                b += 2 * _padded_bytes(1, p["g_shape"][0], p["g_shape"][1],
                                       p["g_dtype"])                                # one-hot
                b += _padded_bytes(1, tc * p["hs"], p["ws"], p["dtype"])            # reshaped src
                b += 2 * _padded_bytes(1, tc * p["hs"], lane, jnp.float32)          # matmul result
            else:
                b += 2 * _padded_bytes(1, tc, HW, p["dtype"])                       # flat src block
        return b

    divisors = [d for d in range(1, C + 1) if C % d == 0]
    # Respect the (8,128) rule on the flat (1, tc, H*W) blocks: second-minor
    # dim must be a sublane multiple or the full channel extent.
    compliant = [d for d in divisors if d == C or d % sub == 0] or divisors
    fitting = [d for d in compliant if working_set(d) <= budget] or [compliant[0]]
    need_steps = min(C, -(-min_steps // max(N, 1)))             # ceil(min_steps / N)
    pipelined = [d for d in fitting if (C // d) >= need_steps]
    return max(pipelined) if pipelined else max(fitting)


# --------------------------------- the kernel --------------------------------

def _make_cbfuse_kernel(plans, H, W):
    num_srcs = len(plans)
    num_mats = sum(1 for p in plans if p["resize"])

    def kernel(*refs):
        tgt_ref = refs[0]
        src_refs = refs[1:1 + num_srcs]
        mat_refs = refs[1 + num_srcs:1 + num_srcs + num_mats]
        out_ref = refs[-2]
        acc_ref = refs[-1]

        tc = acc_ref.shape[0]
        # Initialize the f32 accumulator from the lane-dense, flattened target.
        acc_ref[...] = tgt_ref[0].astype(jnp.float32)

        m = 0
        for p, sref in zip(plans, src_refs):
            if not p["resize"]:
                # Already at target resolution: flat block, plain dense add.
                acc_ref[...] += sref[0].astype(jnp.float32)
                continue

            hs, ws = p["hs"], p["ws"]
            g = mat_refs[m][...]
            m += 1

            # (1, tc, Hs, Ws) -> (tc*Hs, Ws): collapse leading dims (layout friendly).
            src = sref[...].reshape(tc * hs, ws)
            if src.dtype != g.dtype:
                src = src.astype(g.dtype)

            if p["uniform"]:
                # Integer vertical scale rh: a single flattened MXU matmul does
                # the W-gather AND replicates every source row rh times along
                # lanes.  Operands stay in native dtype; accumulate in f32.
                rh = p["rh"]
                width = rh * W
                yg = jnp.dot(src, g, preferred_element_type=jnp.float32)   # (tc*Hs, rh*W)
                yg = yg.reshape(tc, hs, width)
                # Source row r owns the contiguous flat range [r*rh*W, (r+1)*rh*W).
                for r in range(hs):
                    lo = r * width
                    acc_ref[:, lo:lo + width] += yg[:, r, :]
            else:
                # General (non-integer / downsample) fallback: W-gather matmul,
                # then one lane-window add per output row with a *static*
                # source-row selection (no batched matmuls, no broadcasts).
                y = jnp.dot(src, g, preferred_element_type=jnp.float32)    # (tc*Hs, W)
                y = y.reshape(tc, hs, W)
                for h, sh in enumerate(p["h_map"]):
                    lo = h * W
                    acc_ref[:, lo:lo + W] += y[:, sh, :]

        out_ref[...] = acc_ref[...].reshape(out_ref.shape).astype(out_ref.dtype)

    return kernel


# --------------------------------- the wrapper --------------------------------

def cbfuse_pallas(srcs, target):
    """srcs: list of (N, C, Hs, Ws) arrays; target: (N, C, H, W). Returns the sum."""
    N, C, H, W = (int(v) for v in target.shape)
    HW = H * W
    for s in srcs:
        assert s.shape[0] == N and s.shape[1] == C, s.shape

    plans, mats, src_args = [], [], []
    for s in srcs:
        Hs, Ws = int(s.shape[2]), int(s.shape[3])
        if (Hs, Ws) == (H, W):
            plans.append(dict(resize=False, dtype=s.dtype))
            src_args.append(s.reshape(N, C, HW))            # lane-dense flat block
            continue

        h_map = _nearest_map(H, Hs)
        w_map = _nearest_map(W, Ws)
        rh = H // Hs if (Hs > 0 and H % Hs == 0) else 0
        uniform = rh > 0 and np.array_equal(h_map, np.repeat(np.arange(Hs), rh))

        # One-hot W-gather matrix (exact 0/1, built in the activation dtype so
        # bf16 activations get bf16 MXU matmuls; f32 stays f32).
        e_w = (np.arange(Ws)[:, None] == w_map[None, :]).astype(np.float32)   # (Ws, W)
        g = np.tile(e_w, (1, rh)) if uniform else e_w
        g_dtype = s.dtype if jnp.issubdtype(s.dtype, jnp.floating) else jnp.float32
        mats.append(jnp.asarray(g, dtype=g_dtype))

        plans.append(dict(resize=True, hs=Hs, ws=Ws, rh=rh, uniform=uniform,
                          h_map=tuple(int(v) for v in h_map),
                          dtype=s.dtype, g_dtype=g_dtype, g_shape=tuple(g.shape)))
        src_args.append(s)

    budget, vmem_limit = _vmem_budgets()
    tc = _pick_channel_tile(N, C, H, W, plans, target.dtype, budget)
    grid = (N, C // tc)

    # Flat (lane-dense) blocks for target / output / same-size sources; native
    # 4D blocks for resized sources (full (Hs, Ws) extents -> (8,128) rule OK).
    in_specs = [pl.BlockSpec((1, tc, HW), lambda n, c: (n, c, 0))]
    for p in plans:
        if p["resize"]:
            in_specs.append(pl.BlockSpec((1, tc, p["hs"], p["ws"]),
                                         lambda n, c: (n, c, 0, 0)))
        else:
            in_specs.append(pl.BlockSpec((1, tc, HW), lambda n, c: (n, c, 0)))
    # One-hot matrices: constant index_map -> the pipeline only fetches a new
    # block when the index changes, so these are effectively loaded once.
    for m in mats:
        in_specs.append(pl.BlockSpec(m.shape, lambda n, c: (0, 0)))
    out_spec = pl.BlockSpec((1, tc, HW), lambda n, c: (n, c, 0))

    itemsize = jnp.dtype(target.dtype).itemsize
    bytes_accessed = (2 * N * C * HW * itemsize
                      + sum(int(np.prod(s.shape)) * jnp.dtype(s.dtype).itemsize
                            for s in srcs))
    flops = 0
    for p in plans:
        flops += N * C * HW                                   # the fuse add
        if p["resize"]:
            lane = p["rh"] * W if p["uniform"] else W
            flops += 2 * N * C * p["hs"] * p["ws"] * lane     # one-hot matmul

    kernel = _make_cbfuse_kernel(plans, H, W)
    out_flat = pl.pallas_call(
        kernel,
        out_shape=jax.ShapeDtypeStruct((N, C, HW), target.dtype),
        grid_spec=pltpu.PrefetchScalarGridSpec(
            num_scalar_prefetch=0,
            grid=grid,
            in_specs=in_specs,
            out_specs=out_spec,
            scratch_shapes=[pltpu.VMEM((tc, HW), jnp.float32)],
        ),
        compiler_params=pltpu.CompilerParams(
            dimension_semantics=("parallel", "parallel"),
            vmem_limit_bytes=int(vmem_limit),
        ),
        cost_estimate=pl.CostEstimate(
            flops=int(flops), transcendentals=0, bytes_accessed=int(bytes_accessed)),
    )(target.reshape(N, C, HW), *src_args, *mats)

    return out_flat.reshape(N, C, H, W)


class CBFusePallas:
    """JAX/Pallas equivalent of ultralytics CBFuse (nearest upsample + sum)."""

    def __init__(self, idx):
        self.idx = list(idx)

    def __call__(self, xs):
        # xs[:-1] are tuples of tensors (CBLinear split outputs); xs[-1] is a
        # plain NCHW tensor whose spatial size is the fuse target.
        target = xs[-1]
        srcs = [x[self.idx[i]] for i, x in enumerate(xs[:-1])]
        return cbfuse_pallas(srcs, target)


# ----------------------------- pure-JAX reference ----------------------------

def _nearest_resize_ref(x, H, W):
    n, c, hs, ws = x.shape
    h_idx = jnp.asarray(_nearest_map(H, hs))
    w_idx = jnp.asarray(_nearest_map(W, ws))
    return x[:, :, h_idx, :][:, :, :, w_idx]


def _reference(xs, idx):
    target = xs[-1]
    H, W = target.shape[2], target.shape[3]
    out = target
    for i, x in enumerate(xs[:-1]):
        out = out + _nearest_resize_ref(x[idx[i]], H, W)
    return out


if __name__ == "__main__":
    key = jax.random.PRNGKey(0)
    keys = jax.random.split(key, 6)

    N, C = 2, 8
    H = W = 16
    # xs mirrors the ultralytics CBFuse input: earlier entries are CBLinear
    # output tuples (one chunk selected per entry), last entry is the target.
    # Sources exercise both the integer-scale (8->16, 4->16) and the
    # non-integer (6->16) upsample paths.
    xs = [
        (jax.random.normal(keys[0], (N, C, 8, 8), jnp.float32),
         jax.random.normal(keys[1], (N, 2 * C, 8, 8), jnp.float32)),
        (jax.random.normal(keys[2], (N, 4, 4, 4), jnp.float32),
         jax.random.normal(keys[3], (N, C, 4, 4), jnp.float32)),
        (jax.random.normal(keys[4], (N, C, 6, 6), jnp.float32),),
        jax.random.normal(keys[5], (N, C, H, W), jnp.float32),
    ]
    idx = [0, 1, 0]

    module = CBFusePallas(idx)
    out = module(xs)
    out = jax.block_until_ready(out)

    ref = _reference(xs, idx)
    assert out.shape == (N, C, H, W), out.shape
    assert jnp.allclose(out, ref, atol=1e-5, rtol=1e-5), float(
        jnp.max(jnp.abs(out - ref)))

    print("KERNEL_OK")
</pallas_src>

<mosaic_0001>
module attributes {stable_mosaic.version = 11 : i64} {
  func.func @kernel(%arg0: i32, %arg1: i32, %arg2: memref<1x8x256xf32, #tpu.memory_space<vmem>>, %arg3: memref<1x8x8x8xf32, #tpu.memory_space<vmem>>, %arg4: memref<1x8x4x4xf32, #tpu.memory_space<vmem>>, %arg5: memref<1x8x6x6xf32, #tpu.memory_space<vmem>>, %arg6: memref<8x32xf32, #tpu.memory_space<vmem>>, %arg7: memref<4x64xf32, #tpu.memory_space<vmem>>, %arg8: memref<6x16xf32, #tpu.memory_space<vmem>>, %arg9: memref<1x8x256xf32, #tpu.memory_space<vmem>>, %arg10: memref<8x256xf32, #tpu.memory_space<vmem>>) attributes {dimension_semantics = [#tpu.dimension_semantics<parallel>, #tpu.dimension_semantics<parallel>], iteration_bounds = array<i64: 2, 1>, scalar_prefetch = 0 : i64, scratch_operands = 1 : i64, tpu.core_type = #tpu.core_type<tc>, window_params = [{transform_indices = @transform_0, window_bounds = array<i64: 1, 8, 256>}, {transform_indices = @transform_1, window_bounds = array<i64: 1, 8, 8, 8>}, {transform_indices = @transform_2, window_bounds = array<i64: 1, 8, 4, 4>}, {transform_indices = @transform_3, window_bounds = array<i64: 1, 8, 6, 6>}, {pipeline_mode = #tpu.pipeline_mode<synchronous>, transform_indices = @transform_4, window_bounds = array<i64: 8, 32>}, {pipeline_mode = #tpu.pipeline_mode<synchronous>, transform_indices = @transform_5, window_bounds = array<i64: 4, 64>}, {pipeline_mode = #tpu.pipeline_mode<synchronous>, transform_indices = @transform_6, window_bounds = array<i64: 6, 16>}, {transform_indices = @transform_7, window_bounds = array<i64: 1, 8, 256>}]} {
    %c0 = arith.constant 0 : index
    %c0_0 = arith.constant 0 : index
    %c0_1 = arith.constant 0 : index
    %0 = vector.load %arg2[%c0, %c0_0, %c0_1] : memref<1x8x256xf32, #tpu.memory_space<vmem>>, vector<1x8x256xf32>
    %1 = vector.shape_cast %0 : vector<1x8x256xf32> to vector<8x256xf32>
    %c0_2 = arith.constant 0 : index
    %c0_3 = arith.constant 0 : index
    %2 = vector.load %arg10[%c0_2, %c0_3] : memref<8x256xf32, #tpu.memory_space<vmem>>, vector<8x256xf32>
    tpu.vector_store %arg10[%c0_2, %c0_3], %1 {strides = array<i32>} : memref<8x256xf32, #tpu.memory_space<vmem>>, vector<8x256xf32>,
    %c0_4 = arith.constant 0 : index
    %c0_5 = arith.constant 0 : index
    %3 = vector.load %arg6[%c0_4, %c0_5] : memref<8x32xf32, #tpu.memory_space<vmem>>, vector<8x32xf32>
    %c0_6 = arith.constant 0 : index
    %c0_7 = arith.constant 0 : index
    %c0_8 = arith.constant 0 : index
    %c0_9 = arith.constant 0 : index
    %4 = vector.load %arg3[%c0_6, %c0_7, %c0_8, %c0_9] : memref<1x8x8x8xf32, #tpu.memory_space<vmem>>, vector<1x8x8x8xf32>
    %5 = vector.shape_cast %4 : vector<1x8x8x8xf32> to vector<64x8xf32>
    %cst = arith.constant dense<0.000000e+00> : vector<64x32xf32>
    %6 = tpu.matmul %5, %3, %cst {dimension_numbers = #tpu.dot_dimension_numbers<[1], [0], [0], [1], [0, 0, 1, 1], [], []>} : vector<64x8xf32>, vector<8x32xf32>, vector<64x32xf32> -> vector<64x32xf32>
    %7 = vector.shape_cast %6 : vector<64x32xf32> to vector<8x8x32xf32>
    %c0_10 = arith.constant 0 : index
    %c0_11 = arith.constant 0 : index
    %8 = vector.load %arg10[%c0_10, %c0_11] : memref<8x256xf32, #tpu.memory_space<vmem>>, vector<8x32xf32>
    %9 = vector.extract_strided_slice %7 {offsets = [0, 0, 0], sizes = [8, 1, 32], strides = [1, 1, 1]} : vector<8x8x32xf32> to vector<8x1x32xf32>
    %10 = vector.shape_cast %9 : vector<8x1x32xf32> to vector<8x32xf32>
    %11 = arith.addf %8, %10 : vector<8x32xf32>
    %c0_12 = arith.constant 0 : index
    %c0_13 = arith.constant 0 : index
    %12 = vector.load %arg10[%c0_12, %c0_13] : memref<8x256xf32, #tpu.memory_space<vmem>>, vector<8x32xf32>
    tpu.vector_store %arg10[%c0_12, %c0_13], %11 {strides = array<i32>} : memref<8x256xf32, #tpu.memory_space<vmem>>, vector<8x32xf32>,
    %c0_14 = arith.constant 0 : index
    %c32 = arith.constant 32 : index
    %13 = vector.load %arg10[%c0_14, %c32] : memref<8x256xf32, #tpu.memory_space<vmem>>, vector<8x32xf32>
    %14 = vector.extract_strided_slice %7 {offsets = [0, 1, 0], sizes = [8, 1, 32], strides = [1, 1, 1]} : vector<8x8x32xf32> to vector<8x1x32xf32>
    %15 = vector.shape_cast %14 : vector<8x1x32xf32> to vector<8x32xf32>
    %16 = arith.addf %13, %15 : vector<8x32xf32>
    %c0_15 = arith.constant 0 : index
    %c32_16 = arith.constant 32 : index
    %17 = vector.load %arg10[%c0_15, %c32_16] : memref<8x256xf32, #tpu.memory_space<vmem>>, vector<8x32xf32>
    tpu.vector_store %arg10[%c0_15, %c32_16], %16 {strides = array<i32>} : memref<8x256xf32, #tpu.memory_space<vmem>>, vector<8x32xf32>,
    %c0_17 = arith.constant 0 : index
    %c64 = arith.constant 64 : index
    %18 = vector.load %arg10[%c0_17, %c64] : memref<8x256xf32, #tpu.memory_space<vmem>>, vector<8x32xf32>
    %19 = vector.extract_strided_slice %7 {offsets = [0, 2, 0], sizes = [8, 1, 32], strides = [1, 1, 1]} : vector<8x8x32xf32> to vector<8x1x32xf32>
    %20 = vector.shape_cast %19 : vector<8x1x32xf32> to vector<8x32xf32>
    %21 = arith.addf %18, %20 : vector<8x32xf32>
    %c0_18 = arith.constant 0 : index
    %c64_19 = arith.constant 64 : index
    %22 = vector.load %arg10[%c0_18, %c64_19] : memref<8x256xf32, #tpu.memory_space<vmem>>, vector<8x32xf32>
    tpu.vector_store %arg10[%c0_18, %c64_19], %21 {strides = array<i32>} : memref<8x256xf32, #tpu.memory_space<vmem>>, vector<8x32xf32>,
    %c0_20 = arith.constant 0 : index
    %c96 = arith.constant 96 : index
    %23 = vector.load %arg10[%c0_20, %c96] : memref<8x256xf32, #tpu.memory_space<vmem>>, vector<8x32xf32>
    %24 = vector.extract_strided_slice %7 {offsets = [0, 3, 0], sizes = [8, 1, 32], strides = [1, 1, 1]} : vector<8x8x32xf32> to vector<8x1x32xf32>
    %25 = vector.shape_cast %24 : vector<8x1x32xf32> to vector<8x32xf32>
    %26 = arith.addf %23, %25 : vector<8x32xf32>
    %c0_21 = arith.constant 0 : index
    %c96_22 = arith.constant 96 : index
    %27 = vector.load %arg10[%c0_21, %c96_22] : memref<8x256xf32, #tpu.memory_space<vmem>>, vector<8x32xf32>
    tpu.vector_store %arg10[%c0_21, %c96_22], %26 {strides = array<i32>} : memref<8x256xf32, #tpu.memory_space<vmem>>, vector<8x32xf32>,
    %c0_23 = arith.constant 0 : index
    %c128 = arith.constant 128 : index
    %28 = vector.load %arg10[%c0_23, %c128] : memref<8x256xf32, #tpu.memory_space<vmem>>, vector<8x32xf32>
    %29 = vector.extract_strided_slice %7 {offsets = [0, 4, 0], sizes = [8, 1, 32], strides = [1, 1, 1]} : vector<8x8x32xf32> to vector<8x1x32xf32>
    %30 = vector.shape_cast %29 : vector<8x1x32xf32> to vector<8x32xf32>
    %31 = arith.addf %28, %30 : vector<8x32xf32>
    %c0_24 = arith.constant 0 : index
    %c128_25 = arith.constant 128 : index
    %32 = vector.load %arg10[%c0_24, %c128_25] : memref<8x256xf32, #tpu.memory_space<vmem>>, vector<8x32xf32>
    tpu.vector_store %arg10[%c0_24, %c128_25], %31 {strides = array<i32>} : memref<8x256xf32, #tpu.memory_space<vmem>>, vector<8x32xf32>,
    %c0_26 = arith.constant 0 : index
    %c160 = arith.constant 160 : index
    %33 = vector.load %arg10[%c0_26, %c160] : memref<8x256xf32, #tpu.memory_space<vmem>>, vector<8x32xf32>
    %34 = vector.extract_strided_slice %7 {offsets = [0, 5, 0], sizes = [8, 1, 32], strides = [1, 1, 1]} : vector<8x8x32xf32> to vector<8x1x32xf32>
    %35 = vector.shape_cast %34 : vector<8x1x32xf32> to vector<8x32xf32>
    %36 = arith.addf %33, %35 : vector<8x32xf32>
    %c0_27 = arith.constant 0 : index
    %c160_28 = arith.constant 160 : index
    %37 = vector.load %arg10[%c0_27, %c160_28] : memref<8x256xf32, #tpu.memory_space<vmem>>, vector<8x32xf32>
    tpu.vector_store %arg10[%c0_27, %c160_28], %36 {strides = array<i32>} : memref<8x256xf32, #tpu.memory_space<vmem>>, vector<8x32xf32>,
    %c0_29 = arith.constant 0 : index
    %c192 = arith.constant 192 : index
    %38 = vector.load %arg10[%c0_29, %c192] : memref<8x256xf32, #tpu.memory_space<vmem>>, vector<8x32xf32>
    %39 = vector.extract_strided_slice %7 {offsets = [0, 6, 0], sizes = [8, 1, 32], strides = [1, 1, 1]} : vector<8x8x32xf32> to vector<8x1x32xf32>
    %40 = vector.shape_cast %39 : vector<8x1x32xf32> to vector<8x32xf32>
    %41 = arith.addf %38, %40 : vector<8x32xf32>
    %c0_30 = arith.constant 0 : index
    %c192_31 = arith.constant 192 : index
    %42 = vector.load %arg10[%c0_30, %c192_31] : memref<8x256xf32, #tpu.memory_space<vmem>>, vector<8x32xf32>
    tpu.vector_store %arg10[%c0_30, %c192_31], %41 {strides = array<i32>} : memref<8x256xf32, #tpu.memory_space<vmem>>, vector<8x32xf32>,
    %c0_32 = arith.constant 0 : index
    %c224 = arith.constant 224 : index
    %43 = vector.load %arg10[%c0_32, %c224] : memref<8x256xf32, #tpu.memory_space<vmem>>, vector<8x32xf32>
    %44 = vector.extract_strided_slice %7 {offsets = [0, 7, 0], sizes = [8, 1, 32], strides = [1, 1, 1]} : vector<8x8x32xf32> to vector<8x1x32xf32>
    %45 = vector.shape_cast %44 : vector<8x1x32xf32> to vector<8x32xf32>
    %46 = arith.addf %43, %45 : vector<8x32xf32>
    %c0_33 = arith.constant 0 : index
    %c224_34 = arith.constant 224 : index
    %47 = vector.load %arg10[%c0_33, %c224_34] : memref<8x256xf32, #tpu.memory_space<vmem>>, vector<8x32xf32>
    tpu.vector_store %arg10[%c0_33, %c224_34], %46 {strides = array<i32>} : memref<8x256xf32, #tpu.memory_space<vmem>>, vector<8x32xf32>,
    %c0_35 = arith.constant 0 : index
    %c0_36 = arith.constant 0 : index
    %48 = vector.load %arg7[%c0_35, %c0_36] : memref<4x64xf32, #tpu.memory_space<vmem>>, vector<4x64xf32>
    %c0_37 = arith.constant 0 : index
    %c0_38 = arith.constant 0 : index
    %c0_39 = arith.constant 0 : index
    %c0_40 = arith.constant 0 : index
    %49 = vector.load %arg4[%c0_37, %c0_38, %c0_39, %c0_40] : memref<1x8x4x4xf32, #tpu.memory_space<vmem>>, vector<1x8x4x4xf32>
    %50 = vector.shape_cast %49 : vector<1x8x4x4xf32> to vector<32x4xf32>
    %cst_41 = arith.constant dense<0.000000e+00> : vector<32x64xf32>
    %51 = tpu.matmul %50, %48, %cst_41 {dimension_numbers = #tpu.dot_dimension_numbers<[1], [0], [0], [1], [0, 0, 1, 1], [], []>} : vector<32x4xf32>, vector<4x64xf32>, vector<32x64xf32> -> vector<32x64xf32>
    %52 = vector.shape_cast %51 : vector<32x64xf32> to vector<8x4x64xf32>
    %c0_42 = arith.constant 0 : index
    %c0_43 = arith.constant 0 : index
    %53 = vector.load %arg10[%c0_42, %c0_43] : memref<8x256xf32, #tpu.memory_space<vmem>>, vector<8x64xf32>
    %54 = vector.extract_strided_slice %52 {offsets = [0, 0, 0], sizes = [8, 1, 64], strides = [1, 1, 1]} : vector<8x4x64xf32> to vector<8x1x64xf32>
    %55 = vector.shape_cast %54 : vector<8x1x64xf32> to vector<8x64xf32>
    %56 = arith.addf %53, %55 : vector<8x64xf32>
    %c0_44 = arith.constant 0 : index
    %c0_45 = arith.constant 0 : index
    %57 = vector.load %arg10[%c0_44, %c0_45] : memref<8x256xf32, #tpu.memory_space<vmem>>, vector<8x64xf32>
    tpu.vector_store %arg10[%c0_44, %c0_45], %56 {strides = array<i32>} : memref<8x256xf32, #tpu.memory_space<vmem>>, vector<8x64xf32>,
    %c0_46 = arith.constant 0 : index
    %c64_47 = arith.constant 64 : index
    %58 = vector.load %arg10[%c0_46, %c64_47] : memref<8x256xf32, #tpu.memory_space<vmem>>, vector<8x64xf32>
    %59 = vector.extract_strided_slice %52 {offsets = [0, 1, 0], sizes = [8, 1, 64], strides = [1, 1, 1]} : vector<8x4x64xf32> to vector<8x1x64xf32>
    %60 = vector.shape_cast %59 : vector<8x1x64xf32> to vector<8x64xf32>
    %61 = arith.addf %58, %60 : vector<8x64xf32>
    %c0_48 = arith.constant 0 : index
    %c64_49 = arith.constant 64 : index
    %62 = vector.load %arg10[%c0_48, %c64_49] : memref<8x256xf32, #tpu.memory_space<vmem>>, vector<8x64xf32>
    tpu.vector_store %arg10[%c0_48, %c64_49], %61 {strides = array<i32>} : memref<8x256xf32, #tpu.memory_space<vmem>>, vector<8x64xf32>,
    %c0_50 = arith.constant 0 : index
    %c128_51 = arith.constant 128 : index
    %63 = vector.load %arg10[%c0_50, %c128_51] : memref<8x256xf32, #tpu.memory_space<vmem>>, vector<8x64xf32>
    %64 = vector.extract_strided_slice %52 {offsets = [0, 2, 0], sizes = [8, 1, 64], strides = [1, 1, 1]} : vector<8x4x64xf32> to vector<8x1x64xf32>
    %65 = vector.shape_cast %64 : vector<8x1x64xf32> to vector<8x64xf32>
    %66 = arith.addf %63, %65 : vector<8x64xf32>
    %c0_52 = arith.constant 0 : index
    %c128_53 = arith.constant 128 : index
    %67 = vector.load %arg10[%c0_52, %c128_53] : memref<8x256xf32, #tpu.memory_space<vmem>>, vector<8x64xf32>
    tpu.vector_store %arg10[%c0_52, %c128_53], %66 {strides = array<i32>} : memref<8x256xf32, #tpu.memory_space<vmem>>, vector<8x64xf32>,
    %c0_54 = arith.constant 0 : index
    %c192_55 = arith.constant 192 : index
    %68 = vector.load %arg10[%c0_54, %c192_55] : memref<8x256xf32, #tpu.memory_space<vmem>>, vector<8x64xf32>
    %69 = vector.extract_strided_slice %52 {offsets = [0, 3, 0], sizes = [8, 1, 64], strides = [1, 1, 1]} : vector<8x4x64xf32> to vector<8x1x64xf32>
    %70 = vector.shape_cast %69 : vector<8x1x64xf32> to vector<8x64xf32>
    %71 = arith.addf %68, %70 : vector<8x64xf32>
    %c0_56 = arith.constant 0 : index
    %c192_57 = arith.constant 192 : index
    %72 = vector.load %arg10[%c0_56, %c192_57] : memref<8x256xf32, #tpu.memory_space<vmem>>, vector<8x64xf32>
    tpu.vector_store %arg10[%c0_56, %c192_57], %71 {strides = array<i32>} : memref<8x256xf32, #tpu.memory_space<vmem>>, vector<8x64xf32>,
    %c0_58 = arith.constant 0 : index
    %c0_59 = arith.constant 0 : index
    %73 = vector.load %arg8[%c0_58, %c0_59] : memref<6x16xf32, #tpu.memory_space<vmem>>, vector<6x16xf32>
    %c0_60 = arith.constant 0 : index
    %c0_61 = arith.constant 0 : index
    %c0_62 = arith.constant 0 : index
    %c0_63 = arith.constant 0 : index
    %74 = vector.load %arg5[%c0_60, %c0_61, %c0_62, %c0_63] : memref<1x8x6x6xf32, #tpu.memory_space<vmem>>, vector<1x8x6x6xf32>
    %75 = vector.shape_cast %74 : vector<1x8x6x6xf32> to vector<48x6xf32>
    %cst_64 = arith.constant dense<0.000000e+00> : vector<48x16xf32>
    %76 = tpu.matmul %75, %73, %cst_64 {dimension_numbers = #tpu.dot_dimension_numbers<[1], [0], [0], [1], [0, 0, 1, 1], [], []>} : vector<48x6xf32>, vector<6x16xf32>, vector<48x16xf32> -> vector<48x16xf32>
    %77 = vector.shape_cast %76 : vector<48x16xf32> to vector<8x6x16xf32>
    %c0_65 = arith.constant 0 : index
    %c0_66 = arith.constant 0 : index
    %78 = vector.load %arg10[%c0_65, %c0_66] : memref<8x256xf32, #tpu.memory_space<vmem>>, vector<8x16xf32>
    %79 = vector.extract_strided_slice %77 {offsets = [0, 0, 0], sizes = [8, 1, 16], strides = [1, 1, 1]} : vector<8x6x16xf32> to vector<8x1x16xf32>
    %80 = vector.shape_cast %79 : vector<8x1x16xf32> to vector<8x16xf32>
    %81 = arith.addf %78, %80 : vector<8x16xf32>
    %c0_67 = arith.constant 0 : index
    %c0_68 = arith.constant 0 : index
    %82 = vector.load %arg10[%c0_67, %c0_68] : memref<8x256xf32, #tpu.memory_space<vmem>>, vector<8x16xf32>
    tpu.vector_store %arg10[%c0_67, %c0_68], %81 {strides = array<i32>} : memref<8x256xf32, #tpu.memory_space<vmem>>, vector<8x16xf32>,
    %c0_69 = arith.constant 0 : index
    %c16 = arith.constant 16 : index
    %83 = vector.load %arg10[%c0_69, %c16] : memref<8x256xf32, #tpu.memory_space<vmem>>, vector<8x16xf32>
    %84 = vector.extract_strided_slice %77 {offsets = [0, 0, 0], sizes = [8, 1, 16], strides = [1, 1, 1]} : vector<8x6x16xf32> to vector<8x1x16xf32>
    %85 = vector.shape_cast %84 : vector<8x1x16xf32> to vector<8x16xf32>
    %86 = arith.addf %83, %85 : vector<8x16xf32>
    %c0_70 = arith.constant 0 : index
    %c16_71 = arith.constant 16 : index
    %87 = vector.load %arg10[%c0_70, %c16_71] : memref<8x256xf32, #tpu.memory_space<vmem>>, vector<8x16xf32>
    tpu.vector_store %arg10[%c0_70, %c16_71], %86 {strides = array<i32>} : memref<8x256xf32, #tpu.memory_space<vmem>>, vector<8x16xf32>,
    %c0_72 = arith.constant 0 : index
    %c32_73 = arith.constant 32 : index
    %88 = vector.load %arg10[%c0_72, %c32_73] : memref<8x256xf32, #tpu.memory_space<vmem>>, vector<8x16xf32>
    %89 = vector.extract_strided_slice %77 {offsets = [0, 0, 0], sizes = [8, 1, 16], strides = [1, 1, 1]} : vector<8x6x16xf32> to vector<8x1x16xf32>
    %90 = vector.shape_cast %89 : vector<8x1x16xf32> to vector<8x16xf32>
    %91 = arith.addf %88, %90 : vector<8x16xf32>
    %c0_74 = arith.constant 0 : index
    %c32_75 = arith.constant 32 : index
    %92 = vector.load %arg10[%c0_74, %c32_75] : memref<8x256xf32, #tpu.memory_space<vmem>>, vector<8x16xf32>
    tpu.vector_store %arg10[%c0_74, %c32_75], %91 {strides = array<i32>} : memref<8x256xf32, #tpu.memory_space<vmem>>, vector<8x16xf32>,
    %c0_76 = arith.constant 0 : index
    %c48 = arith.constant 48 : index
    %93 = vector.load %arg10[%c0_76, %c48] : memref<8x256xf32, #tpu.memory_space<vmem>>, vector<8x16xf32>
    %94 = vector.extract_strided_slice %77 {offsets = [0, 1, 0], sizes = [8, 1, 16], strides = [1, 1, 1]} : vector<8x6x16xf32> to vector<8x1x16xf32>
    %95 = vector.shape_cast %94 : vector<8x1x16xf32> to vector<8x16xf32>
    %96 = arith.addf %93, %95 : vector<8x16xf32>
    %c0_77 = arith.constant 0 : index
    %c48_78 = arith.constant 48 : index
    %97 = vector.load %arg10[%c0_77, %c48_78] : memref<8x256xf32, #tpu.memory_space<vmem>>, vector<8x16xf32>
    tpu.vector_store %arg10[%c0_77, %c48_78], %96 {strides = array<i32>} : memref<8x256xf32, #tpu.memory_space<vmem>>, vector<8x16xf32>,
    %c0_79 = arith.constant 0 : index
    %c64_80 = arith.constant 64 : index
    %98 = vector.load %arg10[%c0_79, %c64_80] : memref<8x256xf32, #tpu.memory_space<vmem>>, vector<8x16xf32>
    %99 = vector.extract_strided_slice %77 {offsets = [0, 1, 0], sizes = [8, 1, 16], strides = [1, 1, 1]} : vector<8x6x16xf32> to vector<8x1x16xf32>
    %100 = vector.shape_cast %99 : vector<8x1x16xf32> to vector<8x16xf32>
    %101 = arith.addf %98, %100 : vector<8x16xf32>
    %c0_81 = arith.constant 0 : index
    %c64_82 = arith.constant 64 : index
    %102 = vector.load %arg10[%c0_81, %c64_82] : memref<8x256xf32, #tpu.memory_space<vmem>>, vector<8x16xf32>
    tpu.vector_store %arg10[%c0_81, %c64_82], %101 {strides = array<i32>} : memref<8x256xf32, #tpu.memory_space<vmem>>, vector<8x16xf32>,
    %c0_83 = arith.constant 0 : index
    %c80 = arith.constant 80 : index
    %103 = vector.load %arg10[%c0_83, %c80] : memref<8x256xf32, #tpu.memory_space<vmem>>, vector<8x16xf32>
    %104 = vector.extract_strided_slice %77 {offsets = [0, 1, 0], sizes = [8, 1, 16], strides = [1, 1, 1]} : vector<8x6x16xf32> to vector<8x1x16xf32>
    %105 = vector.shape_cast %104 : vector<8x1x16xf32> to vector<8x16xf32>
    %106 = arith.addf %103, %105 : vector<8x16xf32>
    %c0_84 = arith.constant 0 : index
    %c80_85 = arith.constant 80 : index
    %107 = vector.load %arg10[%c0_84, %c80_85] : memref<8x256xf32, #tpu.memory_space<vmem>>, vector<8x16xf32>
    tpu.vector_store %arg10[%c0_84, %c80_85], %106 {strides = array<i32>} : memref<8x256xf32, #tpu.memory_space<vmem>>, vector<8x16xf32>,
    %c0_86 = arith.constant 0 : index
    %c96_87 = arith.constant 96 : index
    %108 = vector.load %arg10[%c0_86, %c96_87] : memref<8x256xf32, #tpu.memory_space<vmem>>, vector<8x16xf32>
    %109 = vector.extract_strided_slice %77 {offsets = [0, 2, 0], sizes = [8, 1, 16], strides = [1, 1, 1]} : vector<8x6x16xf32> to vector<8x1x16xf32>
    %110 = vector.shape_cast %109 : vector<8x1x16xf32> to vector<8x16xf32>
    %111 = arith.addf %108, %110 : vector<8x16xf32>
    %c0_88 = arith.constant 0 : index
    %c96_89 = arith.constant 96 : index
    %112 = vector.load %arg10[%c0_88, %c96_89] : memref<8x256xf32, #tpu.memory_space<vmem>>, vector<8x16xf32>
    tpu.vector_store %arg10[%c0_88, %c96_89], %111 {strides = array<i32>} : memref<8x256xf32, #tpu.memory_space<vmem>>, vector<8x16xf32>,
    %c0_90 = arith.constant 0 : index
    %c112 = arith.constant 112 : index
    %113 = vector.load %arg10[%c0_90, %c112] : memref<8x256xf32, #tpu.memory_space<vmem>>, vector<8x16xf32>
    %114 = vector.extract_strided_slice %77 {offsets = [0, 2, 0], sizes = [8, 1, 16], strides = [1, 1, 1]} : vector<8x6x16xf32> to vector<8x1x16xf32>
    %115 = vector.shape_cast %114 : vector<8x1x16xf32> to vector<8x16xf32>
    %116 = arith.addf %113, %115 : vector<8x16xf32>
    %c0_91 = arith.constant 0 : index
    %c112_92 = arith.constant 112 : index
    %117 = vector.load %arg10[%c0_91, %c112_92] : memref<8x256xf32, #tpu.memory_space<vmem>>, vector<8x16xf32>
    tpu.vector_store %arg10[%c0_91, %c112_92], %116 {strides = array<i32>} : memref<8x256xf32, #tpu.memory_space<vmem>>, vector<8x16xf32>,
    %c0_93 = arith.constant 0 : index
    %c128_94 = arith.constant 128 : index
    %118 = vector.load %arg10[%c0_93, %c128_94] : memref<8x256xf32, #tpu.memory_space<vmem>>, vector<8x16xf32>
    %119 = vector.extract_strided_slice %77 {offsets = [0, 3, 0], sizes = [8, 1, 16], strides = [1, 1, 1]} : vector<8x6x16xf32> to vector<8x1x16xf32>
    %120 = vector.shape_cast %119 : vector<8x1x16xf32> to vector<8x16xf32>
    %121 = arith.addf %118, %120 : vector<8x16xf32>
    %c0_95 = arith.constant 0 : index
    %c128_96 = arith.constant 128 : index
    %122 = vector.load %arg10[%c0_95, %c128_96] : memref<8x256xf32, #tpu.memory_space<vmem>>, vector<8x16xf32>
    tpu.vector_store %arg10[%c0_95, %c128_96], %121 {strides = array<i32>} : memref<8x256xf32, #tpu.memory_space<vmem>>, vector<8x16xf32>,
    %c0_97 = arith.constant 0 : index
    %c144 = arith.constant 144 : index
    %123 = vector.load %arg10[%c0_97, %c144] : memref<8x256xf32, #tpu.memory_space<vmem>>, vector<8x16xf32>
    %124 = vector.extract_strided_slice %77 {offsets = [0, 3, 0], sizes = [8, 1, 16], strides = [1, 1, 1]} : vector<8x6x16xf32> to vector<8x1x16xf32>
    %125 = vector.shape_cast %124 : vector<8x1x16xf32> to vector<8x16xf32>
    %126 = arith.addf %123, %125 : vector<8x16xf32>
    %c0_98 = arith.constant 0 : index
    %c144_99 = arith.constant 144 : index
    %127 = vector.load %arg10[%c0_98, %c144_99] : memref<8x256xf32, #tpu.memory_space<vmem>>, vector<8x16xf32>
    tpu.vector_store %arg10[%c0_98, %c144_99], %126 {strides = array<i32>} : memref<8x256xf32, #tpu.memory_space<vmem>>, vector<8x16xf32>,
    %c0_100 = arith.constant 0 : index
    %c160_101 = arith.constant 160 : index
    %128 = vector.load %arg10[%c0_100, %c160_101] : memref<8x256xf32, #tpu.memory_space<vmem>>, vector<8x16xf32>
    %129 = vector.extract_strided_slice %77 {offsets = [0, 3, 0], sizes = [8, 1, 16], strides = [1, 1, 1]} : vector<8x6x16xf32> to vector<8x1x16xf32>
    %130 = vector.shape_cast %129 : vector<8x1x16xf32> to vector<8x16xf32>
    %131 = arith.addf %128, %130 : vector<8x16xf32>
    %c0_102 = arith.constant 0 : index
    %c160_103 = arith.constant 160 : index
    %132 = vector.load %arg10[%c0_102, %c160_103] : memref<8x256xf32, #tpu.memory_space<vmem>>, vector<8x16xf32>
    tpu.vector_store %arg10[%c0_102, %c160_103], %131 {strides = array<i32>} : memref<8x256xf32, #tpu.memory_space<vmem>>, vector<8x16xf32>,
    %c0_104 = arith.constant 0 : index
    %c176 = arith.constant 176 : index
    %133 = vector.load %arg10[%c0_104, %c176] : memref<8x256xf32, #tpu.memory_space<vmem>>, vector<8x16xf32>
    %134 = vector.extract_strided_slice %77 {offsets = [0, 4, 0], sizes = [8, 1, 16], strides = [1, 1, 1]} : vector<8x6x16xf32> to vector<8x1x16xf32>
    %135 = vector.shape_cast %134 : vector<8x1x16xf32> to vector<8x16xf32>
    %136 = arith.addf %133, %135 : vector<8x16xf32>
    %c0_105 = arith.constant 0 : index
    %c176_106 = arith.constant 176 : index
    %137 = vector.load %arg10[%c0_105, %c176_106] : memref<8x256xf32, #tpu.memory_space<vmem>>, vector<8x16xf32>
    tpu.vector_store %arg10[%c0_105, %c176_106], %136 {strides = array<i32>} : memref<8x256xf32, #tpu.memory_space<vmem>>, vector<8x16xf32>,
    %c0_107 = arith.constant 0 : index
    %c192_108 = arith.constant 192 : index
    %138 = vector.load %arg10[%c0_107, %c192_108] : memref<8x256xf32, #tpu.memory_space<vmem>>, vector<8x16xf32>
    %139 = vector.extract_strided_slice %77 {offsets = [0, 4, 0], sizes = [8, 1, 16], strides = [1, 1, 1]} : vector<8x6x16xf32> to vector<8x1x16xf32>
    %140 = vector.shape_cast %139 : vector<8x1x16xf32> to vector<8x16xf32>
    %141 = arith.addf %138, %140 : vector<8x16xf32>
    %c0_109 = arith.constant 0 : index
    %c192_110 = arith.constant 192 : index
    %142 = vector.load %arg10[%c0_109, %c192_110] : memref<8x256xf32, #tpu.memory_space<vmem>>, vector<8x16xf32>
    tpu.vector_store %arg10[%c0_109, %c192_110], %141 {strides = array<i32>} : memref<8x256xf32, #tpu.memory_space<vmem>>, vector<8x16xf32>,
    %c0_111 = arith.constant 0 : index
    %c208 = arith.constant 208 : index
    %143 = vector.load %arg10[%c0_111, %c208] : memref<8x256xf32, #tpu.memory_space<vmem>>, vector<8x16xf32>
    %144 = vector.extract_strided_slice %77 {offsets = [0, 4, 0], sizes = [8, 1, 16], strides = [1, 1, 1]} : vector<8x6x16xf32> to vector<8x1x16xf32>
    %145 = vector.shape_cast %144 : vector<8x1x16xf32> to vector<8x16xf32>
    %146 = arith.addf %143, %145 : vector<8x16xf32>
    %c0_112 = arith.constant 0 : index
    %c208_113 = arith.constant 208 : index
    %147 = vector.load %arg10[%c0_112, %c208_113] : memref<8x256xf32, #tpu.memory_space<vmem>>, vector<8x16xf32>
    tpu.vector_store %arg10[%c0_112, %c208_113], %146 {strides = array<i32>} : memref<8x256xf32, #tpu.memory_space<vmem>>, vector<8x16xf32>,
    %c0_114 = arith.constant 0 : index
    %c224_115 = arith.constant 224 : index
    %148 = vector.load %arg10[%c0_114, %c224_115] : memref<8x256xf32, #tpu.memory_space<vmem>>, vector<8x16xf32>
    %149 = vector.extract_strided_slice %77 {offsets = [0, 5, 0], sizes = [8, 1, 16], strides = [1, 1, 1]} : vector<8x6x16xf32> to vector<8x1x16xf32>
    %150 = vector.shape_cast %149 : vector<8x1x16xf32> to vector<8x16xf32>
    %151 = arith.addf %148, %150 : vector<8x16xf32>
    %c0_116 = arith.constant 0 : index
    %c224_117 = arith.constant 224 : index
    %152 = vector.load %arg10[%c0_116, %c224_117] : memref<8x256xf32, #tpu.memory_space<vmem>>, vector<8x16xf32>
    tpu.vector_store %arg10[%c0_116, %c224_117], %151 {strides = array<i32>} : memref<8x256xf32, #tpu.memory_space<vmem>>, vector<8x16xf32>,
    %c0_118 = arith.constant 0 : index
    %c240 = arith.constant 240 : index
    %153 = vector.load %arg10[%c0_118, %c240] : memref<8x256xf32, #tpu.memory_space<vmem>>, vector<8x16xf32>
    %154 = vector.extract_strided_slice %77 {offsets = [0, 5, 0], sizes = [8, 1, 16], strides = [1, 1, 1]} : vector<8x6x16xf32> to vector<8x1x16xf32>
    %155 = vector.shape_cast %154 : vector<8x1x16xf32> to vector<8x16xf32>
    %156 = arith.addf %153, %155 : vector<8x16xf32>
    %c0_119 = arith.constant 0 : index
    %c240_120 = arith.constant 240 : index
    %157 = vector.load %arg10[%c0_119, %c240_120] : memref<8x256xf32, #tpu.memory_space<vmem>>, vector<8x16xf32>
    tpu.vector_store %arg10[%c0_119, %c240_120], %156 {strides = array<i32>} : memref<8x256xf32, #tpu.memory_space<vmem>>, vector<8x16xf32>,
    %c0_121 = arith.constant 0 : index
    %c0_122 = arith.constant 0 : index
    %158 = vector.load %arg10[%c0_121, %c0_122] : memref<8x256xf32, #tpu.memory_space<vmem>>, vector<8x256xf32>
    %159 = vector.shape_cast %158 : vector<8x256xf32> to vector<1x8x256xf32>
    %c0_123 = arith.constant 0 : index
    %c0_124 = arith.constant 0 : index
    %c0_125 = arith.constant 0 : index
    %160 = vector.load %arg9[%c0_123, %c0_124, %c0_125] : memref<1x8x256xf32, #tpu.memory_space<vmem>>, vector<1x8x256xf32>
    tpu.vector_store %arg9[%c0_123, %c0_124, %c0_125], %159 {strides = array<i32>} : memref<1x8x256xf32, #tpu.memory_space<vmem>>, vector<1x8x256xf32>,
    return
  }
  func.func @transform_0(%arg0: i32, %arg1: i32) -> (i32, i32, i32) {
    %c0_i32 = arith.constant 0 : i32
    %c0_i32_0 = arith.constant 0 : i32
    return %arg0, %arg1, %c0_i32 : i32, i32, i32
  }
  func.func @transform_1(%arg0: i32, %arg1: i32) -> (i32, i32, i32, i32) {
    %c0_i32 = arith.constant 0 : i32
    %c0_i32_0 = arith.constant 0 : i32
    %c0_i32_1 = arith.constant 0 : i32
    return %arg0, %arg1, %c0_i32, %c0_i32_0 : i32, i32, i32, i32
  }
  func.func @transform_2(%arg0: i32, %arg1: i32) -> (i32, i32, i32, i32) {
    %c0_i32 = arith.constant 0 : i32
    %c0_i32_0 = arith.constant 0 : i32
    %c0_i32_1 = arith.constant 0 : i32
    return %arg0, %arg1, %c0_i32, %c0_i32_0 : i32, i32, i32, i32
  }
  func.func @transform_3(%arg0: i32, %arg1: i32) -> (i32, i32, i32, i32) {
    %c0_i32 = arith.constant 0 : i32
    %c0_i32_0 = arith.constant 0 : i32
    %c0_i32_1 = arith.constant 0 : i32
    return %arg0, %arg1, %c0_i32, %c0_i32_0 : i32, i32, i32, i32
  }
  func.func @transform_4(%arg0: i32, %arg1: i32) -> (i32, i32) {
    %c0_i32 = arith.constant 0 : i32
    %c0_i32_0 = arith.constant 0 : i32
    %c0_i32_1 = arith.constant 0 : i32
    return %c0_i32, %c0_i32_0 : i32, i32
  }
  func.func @transform_5(%arg0: i32, %arg1: i32) -> (i32, i32) {
    %c0_i32 = arith.constant 0 : i32
    %c0_i32_0 = arith.constant 0 : i32
    %c0_i32_1 = arith.constant 0 : i32
    return %c0_i32, %c0_i32_0 : i32, i32
  }
  func.func @transform_6(%arg0: i32, %arg1: i32) -> (i32, i32) {
    %c0_i32 = arith.constant 0 : i32
    %c0_i32_0 = arith.constant 0 : i32
    %c0_i32_1 = arith.constant 0 : i32
    return %c0_i32, %c0_i32_0 : i32, i32
  }
  func.func @transform_7(%arg0: i32, %arg1: i32) -> (i32, i32, i32) {
    %c0_i32 = arith.constant 0 : i32
    %c0_i32_0 = arith.constant 0 : i32
    return %arg0, %arg1, %c0_i32 : i32, i32, i32
  }
}

</mosaic_0001>

<llo_original>
// kernel: tpu_custom_call.1
$region0: #{tpu_custom_call.1}
  #allocation0 [shape = 'u32[]', space=smem, size = 0x4, offset = 0x4, fixed_abs, tag = 'smem constant byte address 0x4 - core index']
  #allocation1 [shape = 'u32[144,128]{1,0:T(1,128)}', space=vmem, size = 0x12000, scoped, tag = 'internal scratch']
  #allocation2 [shape = 'f32[8,256]{1,0:T(8,128)}', space=vmem, size = 0x2000, scoped, tag = 'scratch operand']
  %s0 = inlined_call_operand.vmem [shape: f32[2,8,256], index: 0, kind: input, shape index: {}]
  %s1 = inlined_call_operand.vmem [shape: f32[2,8,8,8], index: 1, kind: input, shape index: {}]
  %s2 = inlined_call_operand.vmem [shape: f32[2,8,4,4], index: 2, kind: input, shape index: {}]
  %s3 = inlined_call_operand.vmem [shape: f32[2,8,6,6], index: 3, kind: input, shape index: {}]
  %s4 = inlined_call_operand.vmem [shape: f32[8,32], index: 4, kind: input, shape index: {}]
  %s5 = inlined_call_operand.vmem [shape: f32[4,64], index: 5, kind: input, shape index: {}]
  %s6 = inlined_call_operand.vmem [shape: f32[6,16], index: 6, kind: input, shape index: {}]
  %s7 = inlined_call_operand.hbm [shape: f32[2,8,256], index: 7, kind: output, shape index: {}]
  %s8 = sld [smem:[#allocation0]]
  $region61: #{tpu_custom_call.1} parent=0
    _
  %s10 = ssub.s32 1, %s8
  %s11 = scalar_select 0, %s10, %s8
  $region1: #{tpu_custom_call.1} parent=0
    #allocation3 [shape = 'u8[16384]{0}', space=vmem, size = 0x4000, scoped, tag = 'output window, operand 0']
    #allocation4 [shape = 's32[2]{0}', space=sflag, size = 0x8, scoped, tag = 'scoped memory for tpu_custom_call.1']
    %12 = vsyncpa [#allocation4], 0
    %s13 = scalar_lea.sflag [#allocation4], 1
    %14 = vsyncpa %s13, 0
    loop: start=0, step=1, limit=4
    $region2: #{tpu_custom_call.1} parent=1 // loop_pre_header
      _
    $region3: #{tpu_custom_call.1} parent=1 // loop_header
      %s16 = sphi 0, %s20
      %p17 = scmp.ge.s32.totalorder %s16, 4
      %s23 = sphi 0, %s35
      %s24 = sphi 0, %s31
      %s25 = sphi 0, %s23
      %s26 = sphi 0, %s24
      %s27 = sphi 0, %s25
      %s28 = sphi 0, %s26
      %s40 = sphi 0, %s42
      %s43 = sphi 0, %s40
      %s44 = sphi 0, %s43
      %s60 = sphi 0, %s44
      %s68 = sphi 0, %s70
      %s71 = sphi 0, %s68
      %s72 = sphi 0, %s71
      %s88 = sphi 0, %s72
      %s96 = sphi 0, %s98
      %s99 = sphi 0, %s96
      %s100 = sphi 0, %s99
      %s116 = sphi 0, %s100
      %s124 = sphi 0, %s126
      %s127 = sphi 0, %s124
      %s128 = sphi 0, %s127
      %s144 = sphi 0, %s128
      %s148 = sphi 0, %s148
      %s150 = sphi 0, %s148
      %s151 = sphi 0, %s150
      %s165 = sphi 0, %s151
      %s169 = sphi 0, %s169
      %s171 = sphi 0, %s169
      %s172 = sphi 0, %s171
      %s186 = sphi 0, %s172
      %s190 = sphi 0, %s190
      %s192 = sphi 0, %s190
      %s193 = sphi 0, %s192
      %s207 = sphi 0, %s193
      %s215 = sphi 0, %s217
      %s218 = sphi 0, %s215
      %s219 = sphi 0, %s218
      %s235 = sphi 0, %s219
    $region4: #{tpu_custom_call.1} parent=1 // loop_header_branch
      %19 = sbr.rel (%p17) target = $region8
    $region5: #{tpu_custom_call.1} parent=1 // loop_body
      %s21 = ssub.s32 %s16, 1
      %s22 = ssub.s32 %s16, 2
      %s29 = sadd.s32 1, %s24
      %p30 = scmp.ge.s32.totalorder %s29, 1
      %s31 = scalar_select %p30, 0, %s29
      %s32 = sadd.s32 1, %s23
      %s33 = scalar_select %p30, %s32, %s23
      %p34 = scmp.ge.s32.totalorder %s33, 2
      %s35 = scalar_select %p34, 0, %s33
      %s36 = ssub.s32 %s23, %s35
      %s37 = ssub.s32 %s24, %s31
      %s38 = sor.u32 %s36, %s37
      %p39 = scmp.eq.s32.totalorder %s38, 0
      %s41 = sadd.s32 %s40, 1
      %s42 = scalar_select %p39, %s40, %s41
      %p45 = pneg %p39
      %p46 = scmp.eq.s32.totalorder %s16, 1
      %p47 = por %p45, %p46
      %p48 = scmp.ne.s32.totalorder %s40, %s43
      %p49 = scmp.eq.s32.totalorder %s16, 0
      %p50 = por %p48, %p49
      %p51 = scmp.ne.s32.totalorder %s40, %s43
      %p52 = scmp.eq.s32.totalorder %s21, 1
      %p53 = por %p51, %p52
      %p54 = scmp.ne.s32.totalorder %s43, %s44
      %p55 = scmp.eq.s32.totalorder %s21, 0
      %p56 = por %p54, %p55
      %p57 = scmp.ne.s32.totalorder %s43, %s44
      %p58 = scmp.eq.s32.totalorder %s22, 1
      %p59 = por %p57, %p58
      %p61 = scmp.ne.s32.totalorder %s44, %s60
      %p62 = scmp.eq.s32.totalorder %s22, 0
      %p63 = por %p61, %p62
      %s64 = ssub.s32 %s23, %s35
      %s65 = ssub.s32 %s24, %s31
      %s66 = sor.u32 %s64, %s65
      %p67 = scmp.eq.s32.totalorder %s66, 0
      %s69 = sadd.s32 %s68, 1
      %s70 = scalar_select %p67, %s68, %s69
      %p73 = pneg %p67
      %p74 = scmp.eq.s32.totalorder %s16, 1
      %p75 = por %p73, %p74
      %p76 = scmp.ne.s32.totalorder %s68, %s71
      %p77 = scmp.eq.s32.totalorder %s16, 0
      %p78 = por %p76, %p77
      %p79 = scmp.ne.s32.totalorder %s68, %s71
      %p80 = scmp.eq.s32.totalorder %s21, 1
      %p81 = por %p79, %p80
      %p82 = scmp.ne.s32.totalorder %s71, %s72
      %p83 = scmp.eq.s32.totalorder %s21, 0
      %p84 = por %p82, %p83
      %p85 = scmp.ne.s32.totalorder %s71, %s72
      %p86 = scmp.eq.s32.totalorder %s22, 1
      %p87 = por %p85, %p86
      %p89 = scmp.ne.s32.totalorder %s72, %s88
      %p90 = scmp.eq.s32.totalorder %s22, 0
      %p91 = por %p89, %p90
      %s92 = ssub.s32 %s23, %s35
      %s93 = ssub.s32 %s24, %s31
      %s94 = sor.u32 %s92, %s93
      %p95 = scmp.eq.s32.totalorder %s94, 0
      %s97 = sadd.s32 %s96, 1
      %s98 = scalar_select %p95, %s96, %s97
      %p101 = pneg %p95
      %p102 = scmp.eq.s32.totalorder %s16, 1
      %p103 = por %p101, %p102
      %p104 = scmp.ne.s32.totalorder %s96, %s99
      %p105 = scmp.eq.s32.totalorder %s16, 0
      %p106 = por %p104, %p105
      %p107 = scmp.ne.s32.totalorder %s96, %s99
      %p108 = scmp.eq.s32.totalorder %s21, 1
      %p109 = por %p107, %p108
      %p110 = scmp.ne.s32.totalorder %s99, %s100
      %p111 = scmp.eq.s32.totalorder %s21, 0
      %p112 = por %p110, %p111
      %p113 = scmp.ne.s32.totalorder %s99, %s100
      %p114 = scmp.eq.s32.totalorder %s22, 1
      %p115 = por %p113, %p114
      %p117 = scmp.ne.s32.totalorder %s100, %s116
      %p118 = scmp.eq.s32.totalorder %s22, 0
      %p119 = por %p117, %p118
      %s120 = ssub.s32 %s23, %s35
      %s121 = ssub.s32 %s24, %s31
      %s122 = sor.u32 %s120, %s121
      %p123 = scmp.eq.s32.totalorder %s122, 0
      %s125 = sadd.s32 %s124, 1
      %s126 = scalar_select %p123, %s124, %s125
      %p129 = pneg %p123
      %p130 = scmp.eq.s32.totalorder %s16, 1
      %p131 = por %p129, %p130
      %p132 = scmp.ne.s32.totalorder %s124, %s127
      %p133 = scmp.eq.s32.totalorder %s16, 0
      %p134 = por %p132, %p133
      %p135 = scmp.ne.s32.totalorder %s124, %s127
      %p136 = scmp.eq.s32.totalorder %s21, 1
      %p137 = por %p135, %p136
      %p138 = scmp.ne.s32.totalorder %s127, %s128
      %p139 = scmp.eq.s32.totalorder %s21, 0
      %p140 = por %p138, %p139
      %p141 = scmp.ne.s32.totalorder %s127, %s128
      %p142 = scmp.eq.s32.totalorder %s22, 1
      %p143 = por %p141, %p142
      %p145 = scmp.ne.s32.totalorder %s128, %s144
      %p146 = scmp.eq.s32.totalorder %s22, 0
      %p147 = por %p145, %p146
      %s149 = sadd.s32 %s148, 1
      %p152 = scmp.eq.s32.totalorder %s16, 1
      %p153 = scmp.ne.s32.totalorder %s148, %s150
      %p154 = scmp.eq.s32.totalorder %s16, 0
      %p155 = por %p153, %p154
      %p156 = scmp.ne.s32.totalorder %s148, %s150
      %p157 = scmp.eq.s32.totalorder %s21, 1
      %p158 = por %p156, %p157
      %p159 = scmp.ne.s32.totalorder %s150, %s151
      %p160 = scmp.eq.s32.totalorder %s21, 0
      %p161 = por %p159, %p160
      %p162 = scmp.ne.s32.totalorder %s150, %s151
      %p163 = scmp.eq.s32.totalorder %s22, 1
      %p164 = por %p162, %p163
      %p166 = scmp.ne.s32.totalorder %s151, %s165
      %p167 = scmp.eq.s32.totalorder %s22, 0
      %p168 = por %p166, %p167
      %s170 = sadd.s32 %s169, 1
      %p173 = scmp.eq.s32.totalorder %s16, 1
      %p174 = scmp.ne.s32.totalorder %s169, %s171
      %p175 = scmp.eq.s32.totalorder %s16, 0
      %p176 = por %p174, %p175
      %p177 = scmp.ne.s32.totalorder %s169, %s171
      %p178 = scmp.eq.s32.totalorder %s21, 1
      %p179 = por %p177, %p178
      %p180 = scmp.ne.s32.totalorder %s171, %s172
      %p181 = scmp.eq.s32.totalorder %s21, 0
      %p182 = por %p180, %p181
      %p183 = scmp.ne.s32.totalorder %s171, %s172
      %p184 = scmp.eq.s32.totalorder %s22, 1
      %p185 = por %p183, %p184
      %p187 = scmp.ne.s32.totalorder %s172, %s186
      %p188 = scmp.eq.s32.totalorder %s22, 0
      %p189 = por %p187, %p188
      %s191 = sadd.s32 %s190, 1
      %p194 = scmp.eq.s32.totalorder %s16, 1
      %p195 = scmp.ne.s32.totalorder %s190, %s192
      %p196 = scmp.eq.s32.totalorder %s16, 0
      %p197 = por %p195, %p196
      %p198 = scmp.ne.s32.totalorder %s190, %s192
      %p199 = scmp.eq.s32.totalorder %s21, 1
      %p200 = por %p198, %p199
      %p201 = scmp.ne.s32.totalorder %s192, %s193
      %p202 = scmp.eq.s32.totalorder %s21, 0
      %p203 = por %p201, %p202
      %p204 = scmp.ne.s32.totalorder %s192, %s193
      %p205 = scmp.eq.s32.totalorder %s22, 1
      %p206 = por %p204, %p205
      %p208 = scmp.ne.s32.totalorder %s193, %s207
      %p209 = scmp.eq.s32.totalorder %s22, 0
      %p210 = por %p208, %p209
      %s211 = ssub.s32 %s23, %s35
      %s212 = ssub.s32 %s24, %s31
      %s213 = sor.u32 %s211, %s212
      %p214 = scmp.eq.s32.totalorder %s213, 0
      %s216 = sadd.s32 %s215, 1
      %s217 = scalar_select %p214, %s215, %s216
      %p220 = pneg %p214
      %p221 = scmp.eq.s32.totalorder %s16, 1
      %p222 = por %p220, %p221
      %p223 = scmp.ne.s32.totalorder %s215, %s218
      %p224 = scmp.eq.s32.totalorder %s16, 0
      %p225 = por %p223, %p224
      %p226 = scmp.ne.s32.totalorder %s215, %s218
      %p227 = scmp.eq.s32.totalorder %s21, 1
      %p228 = por %p226, %p227
      %p229 = scmp.ne.s32.totalorder %s218, %s219
      %p230 = scmp.eq.s32.totalorder %s21, 0
      %p231 = por %p229, %p230
      %p232 = scmp.ne.s32.totalorder %s218, %s219
      %p233 = scmp.eq.s32.totalorder %s22, 1
      %p234 = por %p232, %p233
      %p236 = scmp.ne.s32.totalorder %s219, %s235
      %p237 = scmp.eq.s32.totalorder %s22, 0
      %p238 = por %p236, %p237
      %p239 = scmp.le.s32.totalorder 1, %s16
      %p240 = scmp.lt.s32.totalorder %s16, 3
      %p241 = pnand %p239, %p240
      %p242 = pneg %p241
      // Predicated region
      $region9: #{tpu_custom_call.1} parent=5 // pred_check
        _
      $region10: #{tpu_custom_call.1} parent=5 // pred_check_branch
        %244 = sbr.rel (%p241) target = $region12
      $region11: #{tpu_custom_call.1} parent=5 // pred_region
        %s245 = ssub.s32 %s16, 1
        // Predicated region
        $region13: #{tpu_custom_call.1} parent=11 // pred_check
          %p246 = pneg %p161
        $region14: #{tpu_custom_call.1} parent=11 // pred_check_branch
          %248 = sbr.rel (%p246) target = $region16
        $region15: #{tpu_custom_call.1} parent=11 // pred_region
          _
        $region16: #{tpu_custom_call.1} parent=11 // pred_fallthru
          _
        // Predicated region
        $region17: #{tpu_custom_call.1} parent=11 // pred_check
          %p249 = pneg %p182
        $region18: #{tpu_custom_call.1} parent=11 // pred_check_branch
          %251 = sbr.rel (%p249) target = $region20
        $region19: #{tpu_custom_call.1} parent=11 // pred_region
          _
        $region20: #{tpu_custom_call.1} parent=11 // pred_fallthru
          _
        // Predicated region
        $region21: #{tpu_custom_call.1} parent=11 // pred_check
          %p252 = pneg %p203
        $region22: #{tpu_custom_call.1} parent=11 // pred_check_branch
          %254 = sbr.rel (%p252) target = $region24
        $region23: #{tpu_custom_call.1} parent=11 // pred_region
          _
        $region24: #{tpu_custom_call.1} parent=11 // pred_fallthru
          _
      $region12: #{tpu_custom_call.1} parent=5 // pred_fallthru
        _
      %p255 = scmp.lt.s32.totalorder %s16, 2
      // Predicated region
      $region25: #{tpu_custom_call.1} parent=5 // pred_check
        %p256 = pneg %p255
      $region26: #{tpu_custom_call.1} parent=5 // pred_check_branch
        %258 = sbr.rel (%p256) target = $region28
      $region27: #{tpu_custom_call.1} parent=5 // pred_region
        // Predicated region
        $region29: #{tpu_custom_call.1} parent=27 // pred_check
          %p259 = pneg %p50
        $region30: #{tpu_custom_call.1} parent=27 // pred_check_branch
          %261 = sbr.rel (%p259) target = $region32
        $region31: #{tpu_custom_call.1} parent=27 // pred_region
          %p262 = scmp.lt.s32.totalorder %s23, 1
          %s263 = scalar_select %p262, %s23, 1
          %p264 = scmp.lt.s32.totalorder %s24, 0
          %s265 = scalar_select %p264, %s24, 0
          %s266 = smul.addr %s265, 2
          %s267 = smul.addr %s263, 2
          %s268 = sadd.s32 %s266, %s267
          %s269 = smul.addr %s268, 8
          %s270 = scalar_lea.vmem %s0, %s269
        $region32: #{tpu_custom_call.1} parent=27 // pred_fallthru
          _
        // Predicated region
        $region33: #{tpu_custom_call.1} parent=27 // pred_check
          %p271 = pneg %p78
        $region34: #{tpu_custom_call.1} parent=27 // pred_check_branch
          %273 = sbr.rel (%p271) target = $region36
        $region35: #{tpu_custom_call.1} parent=27 // pred_region
          %s274 = smul.u32 8, %s24
          %p275 = scmp.lt.s32.totalorder %s23, 1
          %s276 = scalar_select %p275, %s23, 1
          %p277 = scmp.lt.s32.totalorder %s274, 7
          %s278 = scalar_select %p277, %s274, 7
          %s279 = smul.addr %s276, 8
          %s280 = sadd.s32 %s278, %s279
          %s281 = smul.addr %s280, 8
          %s282 = scalar_lea.vmem %s1, %s281
          %s283 = smul.u32 8, %s24
        $region36: #{tpu_custom_call.1} parent=27 // pred_fallthru
          _
        // Predicated region
        $region37: #{tpu_custom_call.1} parent=27 // pred_check
          %p284 = pneg %p106
        $region38: #{tpu_custom_call.1} parent=27 // pred_check_branch
          %286 = sbr.rel (%p284) target = $region40
        $region39: #{tpu_custom_call.1} parent=27 // pred_region
          %s287 = smul.u32 8, %s24
          %p288 = scmp.lt.s32.totalorder %s23, 1
          %s289 = scalar_select %p288, %s23, 1
          %p290 = scmp.lt.s32.totalorder %s287, 7
          %s291 = scalar_select %p290, %s287, 7
          %s292 = smul.addr %s289, 8
          %s293 = sadd.s32 %s291, %s292
          %s294 = smul.addr %s293, 4
          %s295 = scalar_lea.vmem %s2, %s294
          %s296 = smul.u32 8, %s24
        $region40: #{tpu_custom_call.1} parent=27 // pred_fallthru
          _
        // Predicated region
        $region41: #{tpu_custom_call.1} parent=27 // pred_check
          %p297 = pneg %p134
        $region42: #{tpu_custom_call.1} parent=27 // pred_check_branch
          %299 = sbr.rel (%p297) target = $region44
        $region43: #{tpu_custom_call.1} parent=27 // pred_region
          %s300 = smul.u32 8, %s24
          %p301 = scmp.lt.s32.totalorder %s23, 1
          %s302 = scalar_select %p301, %s23, 1
          %p303 = scmp.lt.s32.totalorder %s300, 7
          %s304 = scalar_select %p303, %s300, 7
          %s305 = smul.addr %s302, 8
          %s306 = sadd.s32 %s304, %s305
          %s307 = smul.addr %s306, 8
          %s308 = scalar_lea.vmem %s3, %s307
          %s309 = smul.u32 8, %s24
        $region44: #{tpu_custom_call.1} parent=27 // pred_fallthru
          _
      $region28: #{tpu_custom_call.1} parent=5 // pred_fallthru
        _
      %p310 = scmp.le.s32.totalorder 1, %s16
      %p311 = scmp.lt.s32.totalorder %s16, 3
      %p312 = pnand %p310, %p311
      %p313 = pneg %p312
      // Predicated region
      $region45: #{tpu_custom_call.1} parent=5 // pred_check
        _
      $region46: #{tpu_custom_call.1} parent=5 // pred_check_branch
        %315 = sbr.rel (%p312) target = $region48
      $region47: #{tpu_custom_call.1} parent=5 // pred_region
        %s316 = ssub.s32 %s16, 1
        %p317 = scmp.lt.s32.totalorder %s25, 1
        %s318 = scalar_select %p317, %s25, 1
        %p319 = scmp.lt.s32.totalorder %s26, 0
        %s320 = scalar_select %p319, %s26, 0
        %s321 = smul.addr %s320, 2
        %s322 = smul.addr %s318, 2
        %s323 = sadd.s32 %s321, %s322
        %s324 = smul.addr %s323, 8
        %s325 = scalar_lea.vmem %s0, %s324
        %p326 = pneg %p56
        %p327 = pneg %p53
        %s328 = smul.u32 8, %s26
        %p329 = scmp.lt.s32.totalorder %s25, 1
        %s330 = scalar_select %p329, %s25, 1
        %p331 = scmp.lt.s32.totalorder %s328, 7
        %s332 = scalar_select %p331, %s328, 7
        %s333 = smul.addr %s330, 8
        %s334 = sadd.s32 %s332, %s333
        %s335 = smul.addr %s334, 8
        %s336 = scalar_lea.vmem %s1, %s335
        %p337 = pneg %p84
        %p338 = pneg %p81
        %s339 = smul.u32 8, %s26
        %p340 = scmp.lt.s32.totalorder %s25, 1
        %s341 = scalar_select %p340, %s25, 1
        %p342 = scmp.lt.s32.totalorder %s339, 7
        %s343 = scalar_select %p342, %s339, 7
        %s344 = smul.addr %s341, 8
        %s345 = sadd.s32 %s343, %s344
        %s346 = smul.addr %s345, 4
        %s347 = scalar_lea.vmem %s2, %s346
        %p348 = pneg %p112
        %p349 = pneg %p109
        %s350 = smul.u32 8, %s26
        %p351 = scmp.lt.s32.totalorder %s25, 1
        %s352 = scalar_select %p351, %s25, 1
        %p353 = scmp.lt.s32.totalorder %s350, 7
        %s354 = scalar_select %p353, %s350, 7
        %s355 = smul.addr %s352, 8
        %s356 = sadd.s32 %s354, %s355
        %s357 = smul.addr %s356, 8
        %s358 = scalar_lea.vmem %s3, %s357
        %p359 = pneg %p140
        %p360 = pneg %p137
        %p361 = pneg %p161
        %p362 = pneg %p158
        %p363 = pneg %p182
        %p364 = pneg %p179
        %p365 = pneg %p203
        %p366 = pneg %p200
        %p367 = pneg %p231
        %p368 = pneg %p228
        %s369 = sand.u32 %s218, 1
        %s370 = scalar_lea.sflag [#allocation4], %s369
        %s371 = sand.u32 %s218, 1
        %s372 = smul.addr %s371, 16
        %s373 = scalar_lea.vmem [#allocation3], %s372
        %p374 = scmp.lt.s32.totalorder %s25, 1
        %s375 = scalar_select %p374, %s25, 1
        %p376 = scmp.lt.s32.totalorder %s26, 0
        %s377 = scalar_select %p376, %s26, 0
        %s378 = smul.addr %s377, 2
        %s379 = smul.addr %s375, 2
        %s380 = sadd.s32 %s378, %s379
        %s381 = smul.addr %s380, 8
        %s382 = scalar_lea.vmem %s0, %s381
        %s383 = smul.u32 8, %s26
        %p384 = scmp.lt.s32.totalorder %s25, 1
        %s385 = scalar_select %p384, %s25, 1
        %p386 = scmp.lt.s32.totalorder %s383, 7
        %s387 = scalar_select %p386, %s383, 7
        %s388 = smul.addr %s385, 8
        %s389 = sadd.s32 %s387, %s388
        %s390 = smul.addr %s389, 8
        %s391 = scalar_lea.vmem %s1, %s390
        %s392 = smul.u32 8, %s26
        %s393 = smul.u32 8, %s26
        %p394 = scmp.lt.s32.totalorder %s25, 1
        %s395 = scalar_select %p394, %s25, 1
        %p396 = scmp.lt.s32.totalorder %s393, 7
        %s397 = scalar_select %p396, %s393, 7
        %s398 = smul.addr %s395, 8
        %s399 = sadd.s32 %s397, %s398
        %s400 = smul.addr %s399, 4
        %s401 = scalar_lea.vmem %s2, %s400
        %s402 = smul.u32 8, %s26
        %s403 = smul.u32 8, %s26
        %p404 = scmp.lt.s32.totalorder %s25, 1
        %s405 = scalar_select %p404, %s25, 1
        %p406 = scmp.lt.s32.totalorder %s403, 7
        %s407 = scalar_select %p406, %s403, 7
        %s408 = smul.addr %s405, 8
        %s409 = sadd.s32 %s407, %s408
        %s410 = smul.addr %s409, 8
        %s411 = scalar_lea.vmem %s3, %s410
        %s412 = smul.u32 8, %s26
        %v413 = vld [vmem:[%s382] sm:$0xff]
        %v414 = vld [vmem:[%s382 + $0x8] sm:$0xff]
        %415 = vst [vmem:[#allocation2] sm:$0xff] %v413
        %416 = vst [vmem:[#allocation2 + $0x8] sm:$0xff] %v414
        %v417 = vld [vmem:[%s4] sm:$0xff]
        %v418 = vld [vmem:[%s391] sm:$0xff]
        %v419 = vld [vmem:[%s391 + $0x8] sm:$0xff]
        %v420 = vld [vmem:[%s391 + $0x10] sm:$0xff]
        %v421 = vld [vmem:[%s391 + $0x18] sm:$0xff]
        %v422 = vld [vmem:[%s391 + $0x20] sm:$0xff]
        %v423 = vld [vmem:[%s391 + $0x28] sm:$0xff]
        %v424 = vld [vmem:[%s391 + $0x30] sm:$0xff]
        %v425 = vld [vmem:[%s391 + $0x38] sm:$0xff]
        %vm426 = vcmask 64512
        %v428 = vsel %vm426, %v418, 0
        %v431 = vsel %vm426, %v419, 0
        %v434 = vsel %vm426, %v420, 0
        %v437 = vsel %vm426, %v421, 0
        %v440 = vsel %vm426, %v422, 0
        %v443 = vsel %vm426, %v423, 0
        %v446 = vsel %vm426, %v424, 0
        %v449 = vsel %vm426, %v425, 0
        %451 = vmatprep.subr.mxu0 0.0
        %452 = vmatpush1.msra.mxu0 %v417
        %453 = vmatprep.subr.mxu0 0.0
        %454 = vmatpush1.msra.mxu0 0.0
        %455 = vmatprep.subr.mxu0 0.0
        %456 = vmatpush1.msra.mxu0 0.0
        %457 = vmatprep.subr.mxu0 0.0
        %458 = vmatpush1.msra.mxu0 0.0
        %459 = vmatprep.subr.mxu0 0.0
        %460 = vmatpush1.msra.mxu0 0.0
        %461 = vmatprep.subr.mxu0 0.0
        %462 = vmatpush1.msra.mxu0 0.0
        %463 = vmatprep.subr.mxu0 0.0
        %464 = vmatpush1.msra.mxu0 0.0
        %465 = vmatprep.subr.mxu0 0.0
        %466 = vmatpush1.msra.mxu0 0.0
        %467 = vmatprep.subr.mxu0 0.0
        %468 = vmatpush1.msra.mxu0 0.0
        %469 = vmatprep.subr.mxu0 0.0
        %470 = vmatpush1.msra.mxu0 0.0
        %471 = vmatprep.subr.mxu0 0.0
        %472 = vmatpush1.msra.mxu0 0.0
        %473 = vmatprep.subr.mxu0 0.0
        %474 = vmatpush1.msra.mxu0 0.0
        %475 = vmatprep.subr.mxu0 0.0
        %476 = vmatpush1.msra.mxu0 0.0
        %477 = vmatprep.subr.mxu0 0.0
        %478 = vmatpush1.msra.mxu0 0.0
        %479 = vmatprep.subr.mxu0 0.0
        %480 = vmatpush1.msra.mxu0 0.0
        %481 = vmatprep.subr.mxu0 0.0
        %482 = vmatpush1.msra.mxu0 0.0
        %483 = vmatprep.subr.mxu0 0.0
        %484 = vmatpush1.msra.mxu0 0.0
        %485 = vmatprep.subr.mxu0 0.0
        %486 = vmatpush1.msra.mxu0 0.0
        %487 = vmatprep.subr.mxu0 0.0
        %488 = vmatpush1.msra.mxu0 0.0
        %489 = vmatprep.subr.mxu0 0.0
        %490 = vmatpush1.msra.mxu0 0.0
        %491 = vmatprep.subr.mxu0 0.0
        %492 = vmatpush1.msra.mxu0 0.0
        %493 = vmatprep.subr.mxu0 0.0
        %494 = vmatpush1.msra.mxu0 0.0
        %495 = vmatprep.subr.mxu0 0.0
        %496 = vmatpush1.msra.mxu0 0.0
        %497 = vmatprep.subr.mxu0 0.0
        %498 = vmatpush1.msra.mxu0 0.0
        %499 = vmatprep.subr.mxu0 0.0
        %500 = vmatpush1.msra.mxu0 0.0
        %501 = vmatprep.subr.mxu0 0.0
        %502 = vmatpush1.msra.mxu0 0.0
        %503 = vmatprep.subr.mxu0 0.0
        %504 = vmatpush1.msra.mxu0 0.0
        %505 = vmatprep.subr.mxu0 0.0
        %506 = vmatpush1.msra.mxu0 0.0
        %507 = vmatprep.subr.mxu0 0.0
        %508 = vmatpush1.msra.mxu0 0.0
        %509 = vmatprep.subr.mxu0 0.0
        %510 = vmatpush1.msra.mxu0 0.0
        %511 = vmatprep.subr.mxu0 0.0
        %512 = vmatpush1.msra.mxu0 0.0
        %513 = vmatprep.subr.mxu0 0.0
        %514 = vmatpush1.msra.mxu0 0.0
        %515 = vmatprep.mubr.f32.mxu0 0.0
        %516 = vmatmul.mubr.f32.gmra.mrb[0].mxu0 %v428
        %v517 = vpop.f32.mrb[0].mxu0
        %v518 = vadd.f32 0.0, %v517
        %v519 = vpop.f32.mrb[0].mxu0
        %520 = vmatprep.mubr.f32.mxu0 0.0
        %521 = vmatmul.mubr.f32.gmra.mrb[0].mxu0 %v431
        %v522 = vpop.f32.mrb[0].mxu0
        %v523 = vadd.f32 0.0, %v522
        %v524 = vpop.f32.mrb[0].mxu0
        %525 = vmatprep.mubr.f32.mxu0 0.0
        %526 = vmatmul.mubr.f32.gmra.mrb[0].mxu0 %v434
        %v527 = vpop.f32.mrb[0].mxu0
        %v528 = vadd.f32 0.0, %v527
        %v529 = vpop.f32.mrb[0].mxu0
        %530 = vmatprep.mubr.f32.mxu0 0.0
        %531 = vmatmul.mubr.f32.gmra.mrb[0].mxu0 %v437
        %v532 = vpop.f32.mrb[0].mxu0
        %v533 = vadd.f32 0.0, %v532
        %v534 = vpop.f32.mrb[0].mxu0
        %535 = vmatprep.mubr.f32.mxu0 0.0
        %536 = vmatmul.mubr.f32.gmra.mrb[0].mxu0 %v440
        %v537 = vpop.f32.mrb[0].mxu0
        %v538 = vadd.f32 0.0, %v537
        %v539 = vpop.f32.mrb[0].mxu0
        %540 = vmatprep.mubr.f32.mxu0 0.0
        %541 = vmatmul.mubr.f32.gmra.mrb[0].mxu0 %v443
        %v542 = vpop.f32.mrb[0].mxu0
        %v543 = vadd.f32 0.0, %v542
        %v544 = vpop.f32.mrb[0].mxu0
        %545 = vmatprep.mubr.f32.mxu0 0.0
        %546 = vmatmul.mubr.f32.gmra.mrb[0].mxu0 %v446
        %v547 = vpop.f32.mrb[0].mxu0
        %v548 = vadd.f32 0.0, %v547
        %v549 = vpop.f32.mrb[0].mxu0
        %550 = vmatprep.mubr.f32.mxu0 0.0
        %551 = vmatmul.mubr.f32.gmra.mrb[0].mxu0 %v449
        %v552 = vpop.f32.mrb[0].mxu0
        %v553 = vadd.f32 0.0, %v552
        %v554 = vpop.f32.mrb[0].mxu0
        %555 = vdwg.mxu0
        %v556 = vld [vmem:[#allocation2] sm:$0xff]
        %v565 = vrot.slane %v523, 7
        %vm566 = vcmask 1041409
        %v567 = vsel %vm566, %v565, %v518
        %v568 = vrot.slane %v528, 6
        %vm569 = vcmask 1042434
        %v570 = vsel %vm569, %v568, %v567
        %v571 = vrot.slane %v533, 5
        %vm572 = vcmask 1043459
        %v573 = vsel %vm572, %v571, %v570
        %v574 = vrot.slane %v538, 4
        %vm575 = vcmask 1044484
        %v576 = vsel %vm575, %v574, %v573
        %v577 = vrot.slane %v543, 3
        %vm578 = vcmask 1045509
        %v579 = vsel %vm578, %v577, %v576
        %v580 = vrot.slane %v548, 2
        %vm581 = vcmask 1046534
        %v582 = vsel %vm581, %v580, %v579
        %v583 = vrot.slane %v553, 1
        %vm584 = vcmask 1047559
        %v585 = vsel %vm584, %v583, %v582
        %v587 = vadd.f32 %v556, %v585
        %vm588 = vcmask 261120
        %589 = vst.msk [vmem:[#allocation2] sm:$0xff] %vm588, %v587
        %v590 = vld [vmem:[#allocation2] sm:$0xff]
        %v591 = vrot.slane %v518, 1
        %v592 = vsel %vm566, %v523, %v591
        %v593 = vrot.slane %v528, 7
        %v594 = vsel %vm569, %v593, %v592
        %v595 = vrot.slane %v533, 6
        %v596 = vsel %vm572, %v595, %v594
        %v597 = vrot.slane %v538, 5
        %v598 = vsel %vm575, %v597, %v596
        %v599 = vrot.slane %v543, 4
        %v600 = vsel %vm578, %v599, %v598
        %v601 = vrot.slane %v548, 3
        %v602 = vsel %vm581, %v601, %v600
        %v603 = vrot.slane %v553, 2
        %v604 = vsel %vm584, %v603, %v602
        %605 = vrot.lane.b32.xlu0 %v604, 32
        %v606 = vpop.permute.xlu0 %605
        %v608 = vadd.f32 %v590, %v606
        %vm609 = vcmask 523520
        %610 = vst.msk [vmem:[#allocation2] sm:$0xff] %vm609, %v608
        %v611 = vld [vmem:[#allocation2] sm:$0xff]
        %v612 = vrot.slane %v518, 2
        %v613 = vrot.slane %v523, 1
        %v614 = vsel %vm566, %v613, %v612
        %v615 = vsel %vm569, %v528, %v614
        %v616 = vrot.slane %v533, 7
        %v617 = vsel %vm572, %v616, %v615
        %v618 = vrot.slane %v538, 6
        %v619 = vsel %vm575, %v618, %v617
        %v620 = vrot.slane %v543, 5
        %v621 = vsel %vm578, %v620, %v619
        %v622 = vrot.slane %v548, 4
        %v623 = vsel %vm581, %v622, %v621
        %v624 = vrot.slane %v553, 3
        %v625 = vsel %vm584, %v624, %v623
        %626 = vrot.lane.b32.xlu0 %v625, 64
        %v627 = vpop.permute.xlu0 %626
        %v629 = vadd.f32 %v611, %v627
        %vm630 = vcmask 785920
        %631 = vst.msk [vmem:[#allocation2] sm:$0xff] %vm630, %v629
        %v632 = vld [vmem:[#allocation2] sm:$0xff]
        %v633 = vrot.slane %v518, 3
        %v634 = vrot.slane %v523, 2
        %v635 = vsel %vm566, %v634, %v633
        %v636 = vrot.slane %v528, 1
        %v637 = vsel %vm569, %v636, %v635
        %v638 = vsel %vm572, %v533, %v637
        %v639 = vrot.slane %v538, 7
        %v640 = vsel %vm575, %v639, %v638
        %v641 = vrot.slane %v543, 6
        %v642 = vsel %vm578, %v641, %v640
        %v643 = vrot.slane %v548, 5
        %v644 = vsel %vm581, %v643, %v642
        %v645 = vrot.slane %v553, 4
        %v646 = vsel %vm584, %v645, %v644
        %647 = vrot.lane.b32.xlu0 %v646, 96
        %v648 = vpop.permute.xlu0 %647
        %v650 = vadd.f32 %v632, %v648
        %vm651 = vcmask 1048320
        %652 = vst.msk [vmem:[#allocation2] sm:$0xff] %vm651, %v650
        %v653 = vld [vmem:[#allocation2 + $0x8] sm:$0xff]
        %v654 = vrot.slane %v518, 4
        %v655 = vrot.slane %v523, 3
        %v656 = vsel %vm566, %v655, %v654
        %v657 = vrot.slane %v528, 2
        %v658 = vsel %vm569, %v657, %v656
        %v659 = vrot.slane %v533, 1
        %v660 = vsel %vm572, %v659, %v658
        %v661 = vsel %vm575, %v538, %v660
        %v662 = vrot.slane %v543, 7
        %v663 = vsel %vm578, %v662, %v661
        %v664 = vrot.slane %v548, 6
        %v665 = vsel %vm581, %v664, %v663
        %v666 = vrot.slane %v553, 5
        %v667 = vsel %vm584, %v666, %v665
        %v669 = vadd.f32 %v653, %v667
        %670 = vst.msk [vmem:[#allocation2 + $0x8] sm:$0xff] %vm588, %v669
        %v671 = vld [vmem:[#allocation2 + $0x8] sm:$0xff]
        %v672 = vrot.slane %v518, 5
        %v673 = vrot.slane %v523, 4
        %v674 = vsel %vm566, %v673, %v672
        %v675 = vrot.slane %v528, 3
        %v676 = vsel %vm569, %v675, %v674
        %v677 = vrot.slane %v533, 2
        %v678 = vsel %vm572, %v677, %v676
        %v679 = vrot.slane %v538, 1
        %v680 = vsel %vm575, %v679, %v678
        %v681 = vsel %vm578, %v543, %v680
        %v682 = vrot.slane %v548, 7
        %v683 = vsel %vm581, %v682, %v681
        %v684 = vrot.slane %v553, 6
        %v685 = vsel %vm584, %v684, %v683
        %686 = vrot.lane.b32.xlu0 %v685, 32
        %v687 = vpop.permute.xlu0 %686
        %v689 = vadd.f32 %v671, %v687
        %690 = vst.msk [vmem:[#allocation2 + $0x8] sm:$0xff] %vm609, %v689
        %v691 = vld [vmem:[#allocation2 + $0x8] sm:$0xff]
        %v692 = vrot.slane %v518, 6
        %v693 = vrot.slane %v523, 5
        %v694 = vsel %vm566, %v693, %v692
        %v695 = vrot.slane %v528, 4
        %v696 = vsel %vm569, %v695, %v694
        %v697 = vrot.slane %v533, 3
        %v698 = vsel %vm572, %v697, %v696
        %v699 = vrot.slane %v538, 2
        %v700 = vsel %vm575, %v699, %v698
        %v701 = vrot.slane %v543, 1
        %v702 = vsel %vm578, %v701, %v700
        %v703 = vsel %vm581, %v548, %v702
        %v704 = vrot.slane %v553, 7
        %v705 = vsel %vm584, %v704, %v703
        %706 = vrot.lane.b32.xlu0 %v705, 64
        %v707 = vpop.permute.xlu0 %706
        %v709 = vadd.f32 %v691, %v707
        %710 = vst.msk [vmem:[#allocation2 + $0x8] sm:$0xff] %vm630, %v709
        %v711 = vld [vmem:[#allocation2 + $0x8] sm:$0xff]
        %v712 = vrot.slane %v518, 7
        %v713 = vrot.slane %v523, 6
        %v714 = vsel %vm566, %v713, %v712
        %v715 = vrot.slane %v528, 5
        %v716 = vsel %vm569, %v715, %v714
        %v717 = vrot.slane %v533, 4
        %v718 = vsel %vm572, %v717, %v716
        %v719 = vrot.slane %v538, 3
        %v720 = vsel %vm575, %v719, %v718
        %v721 = vrot.slane %v543, 2
        %v722 = vsel %vm578, %v721, %v720
        %v723 = vrot.slane %v548, 1
        %v724 = vsel %vm581, %v723, %v722
        %v725 = vsel %vm584, %v553, %v724
        %726 = vrot.lane.b32.xlu0 %v725, 96
        %v727 = vpop.permute.xlu0 %726
        %v729 = vadd.f32 %v711, %v727
        %730 = vst.msk [vmem:[#allocation2 + $0x8] sm:$0xff] %vm651, %v729
        %v731 = vld [vmem:[%s5] sm:$0xf]
        %v732 = vld [vmem:[%s401] sm:$0xf]
        %v733 = vld [vmem:[%s401 + $0x4] sm:$0xf]
        %v734 = vld [vmem:[%s401 + $0x8] sm:$0xf]
        %v735 = vld [vmem:[%s401 + $0xc] sm:$0xf]
        %v736 = vld [vmem:[%s401 + $0x10] sm:$0xf]
        %v737 = vld [vmem:[%s401 + $0x14] sm:$0xf]
        %v738 = vld [vmem:[%s401 + $0x18] sm:$0xf]
        %v739 = vld [vmem:[%s401 + $0x1c] sm:$0xf]
        %v748 = vcombine.low %v732, %v733
        %v749 = vcombine.low %v734, %v735
        %v750 = vcombine.low %v736, %v737
        %v751 = vcombine.low %v738, %v739
        %vm752 = vcmask 31744
        %v753 = vsel %vm752, %v748, 0
        %v755 = vsel %vm752, %v749, 0
        %v757 = vsel %vm752, %v750, 0
        %v759 = vsel %vm752, %v751, 0
        %vm761 = vcmask 1043456
        %v763 = vsel %vm761, %v731, 0
        %765 = vmatprep.subr.mxu0 0.0
        %766 = vmatpush1.msra.mxu0 %v763
        %767 = vmatprep.subr.mxu0 0.0
        %768 = vmatpush1.msra.mxu0 0.0
        %769 = vmatprep.subr.mxu0 0.0
        %770 = vmatpush1.msra.mxu0 0.0
        %771 = vmatprep.subr.mxu0 0.0
        %772 = vmatpush1.msra.mxu0 0.0
        %773 = vmatprep.subr.mxu0 0.0
        %774 = vmatpush1.msra.mxu0 0.0
        %775 = vmatprep.subr.mxu0 0.0
        %776 = vmatpush1.msra.mxu0 0.0
        %777 = vmatprep.subr.mxu0 0.0
        %778 = vmatpush1.msra.mxu0 0.0
        %779 = vmatprep.subr.mxu0 0.0
        %780 = vmatpush1.msra.mxu0 0.0
        %781 = vmatprep.subr.mxu0 0.0
        %782 = vmatpush1.msra.mxu0 0.0
        %783 = vmatprep.subr.mxu0 0.0
        %784 = vmatpush1.msra.mxu0 0.0
        %785 = vmatprep.subr.mxu0 0.0
        %786 = vmatpush1.msra.mxu0 0.0
        %787 = vmatprep.subr.mxu0 0.0
        %788 = vmatpush1.msra.mxu0 0.0
        %789 = vmatprep.subr.mxu0 0.0
        %790 = vmatpush1.msra.mxu0 0.0
        %791 = vmatprep.subr.mxu0 0.0
        %792 = vmatpush1.msra.mxu0 0.0
        %793 = vmatprep.subr.mxu0 0.0
        %794 = vmatpush1.msra.mxu0 0.0
        %795 = vmatprep.subr.mxu0 0.0
        %796 = vmatpush1.msra.mxu0 0.0
        %797 = vmatprep.subr.mxu0 0.0
        %798 = vmatpush1.msra.mxu0 0.0
        %799 = vmatprep.subr.mxu0 0.0
        %800 = vmatpush1.msra.mxu0 0.0
        %801 = vmatprep.subr.mxu0 0.0
        %802 = vmatpush1.msra.mxu0 0.0
        %803 = vmatprep.subr.mxu0 0.0
        %804 = vmatpush1.msra.mxu0 0.0
        %805 = vmatprep.subr.mxu0 0.0
        %806 = vmatpush1.msra.mxu0 0.0
        %807 = vmatprep.subr.mxu0 0.0
        %808 = vmatpush1.msra.mxu0 0.0
        %809 = vmatprep.subr.mxu0 0.0
        %810 = vmatpush1.msra.mxu0 0.0
        %811 = vmatprep.subr.mxu0 0.0
        %812 = vmatpush1.msra.mxu0 0.0
        %813 = vmatprep.subr.mxu0 0.0
        %814 = vmatpush1.msra.mxu0 0.0
        %815 = vmatprep.subr.mxu0 0.0
        %816 = vmatpush1.msra.mxu0 0.0
        %817 = vmatprep.subr.mxu0 0.0
        %818 = vmatpush1.msra.mxu0 0.0
        %819 = vmatprep.subr.mxu0 0.0
        %820 = vmatpush1.msra.mxu0 0.0
        %821 = vmatprep.subr.mxu0 0.0
        %822 = vmatpush1.msra.mxu0 0.0
        %823 = vmatprep.subr.mxu0 0.0
        %824 = vmatpush1.msra.mxu0 0.0
        %825 = vmatprep.subr.mxu0 0.0
        %826 = vmatpush1.msra.mxu0 0.0
        %827 = vmatprep.subr.mxu0 0.0
        %828 = vmatpush1.msra.mxu0 0.0
        %829 = vmatprep.mubr.f32.mxu0 0.0
        %830 = vmatmul.mubr.f32.gmra.mrb[0].mxu0 %v753
        %v831 = vpop.f32.mrb[0].mxu0
        %v832 = vadd.f32 0.0, %v831
        %v833 = vpop.f32.mrb[0].mxu0
        %834 = vmatprep.mubr.f32.mxu0 0.0
        %835 = vmatmul.mubr.f32.gmra.mrb[0].mxu0 %v755
        %v836 = vpop.f32.mrb[0].mxu0
        %v837 = vadd.f32 0.0, %v836
        %v838 = vpop.f32.mrb[0].mxu0
        %839 = vmatprep.mubr.f32.mxu0 0.0
        %840 = vmatmul.mubr.f32.gmra.mrb[0].mxu0 %v757
        %v841 = vpop.f32.mrb[0].mxu0
        %v842 = vadd.f32 0.0, %v841
        %v843 = vpop.f32.mrb[0].mxu0
        %844 = vmatprep.mubr.f32.mxu0 0.0
        %845 = vmatmul.mubr.f32.gmra.mrb[0].mxu0 %v759
        %v846 = vpop.f32.mrb[0].mxu0
        %v847 = vadd.f32 0.0, %v846
        %v848 = vpop.f32.mrb[0].mxu0
        %849 = vdwg.mxu0
        %v854 = vcombine.high %v832, %v832
        %v855 = vcombine.high %v837, %v837
        %v856 = vcombine.high %v842, %v842
        %v857 = vcombine.high %v847, %v847
        %v858 = vld [vmem:[#allocation2] sm:$0xff]
        %v859 = vlaneseq
        %v860 = vshrl.u32 %v859, 7
        %v861 = vsub.s32 0, %v860
        %v862 = vrot.slane %v832, %v861
        %v863 = vlaneseq
        %v864 = vshrl.u32 %v863, 7
        %v865 = vsub.s32 0, %v864
        %v866 = vrot.slane %v854, %v865
        %v867 = vlaneseq
        %v868 = vshrl.u32 %v867, 7
        %v869 = vsub.s32 0, %v868
        %v870 = vrot.slane %v837, %v869
        %v871 = vlaneseq
        %v872 = vshrl.u32 %v871, 7
        %v873 = vsub.s32 0, %v872
        %v874 = vrot.slane %v855, %v873
        %v875 = vlaneseq
        %v876 = vshrl.u32 %v875, 7
        %v877 = vsub.s32 0, %v876
        %v878 = vrot.slane %v842, %v877
        %v879 = vlaneseq
        %v880 = vshrl.u32 %v879, 7
        %v881 = vsub.s32 0, %v880
        %v882 = vrot.slane %v856, %v881
        %v883 = vlaneseq
        %v884 = vshrl.u32 %v883, 7
        %v885 = vsub.s32 0, %v884
        %v886 = vrot.slane %v847, %v885
        %v887 = vlaneseq
        %v888 = vshrl.u32 %v887, 7
        %v889 = vsub.s32 0, %v888
        %v890 = vrot.slane %v857, %v889
        %v891 = vsel %vm566, %v866, %v862
        %v892 = vsel %vm569, %v870, %v891
        %v893 = vsel %vm572, %v874, %v892
        %v894 = vsel %vm575, %v878, %v893
        %v895 = vsel %vm578, %v882, %v894
        %v896 = vsel %vm581, %v886, %v895
        %v897 = vsel %vm584, %v890, %v896
        %v899 = vadd.f32 %v858, %v897
        %vm900 = vcmask 523264
        %901 = vst.msk [vmem:[#allocation2] sm:$0xff] %vm900, %v899
        %v902 = vld [vmem:[#allocation2] sm:$0xff]
        %v903 = vlaneseq
        %v904 = vshrl.u32 %v903, 7
        %v905 = vsub.s32 1, %v904
        %v906 = vrot.slane %v832, %v905
        %v907 = vlaneseq
        %v908 = vshrl.u32 %v907, 7
        %v909 = vsub.s32 1, %v908
        %v910 = vrot.slane %v854, %v909
        %v911 = vlaneseq
        %v912 = vshrl.u32 %v911, 7
        %v913 = vsub.s32 1, %v912
        %v914 = vrot.slane %v837, %v913
        %v915 = vlaneseq
        %v916 = vshrl.u32 %v915, 7
        %v917 = vsub.s32 1, %v916
        %v918 = vrot.slane %v855, %v917
        %v919 = vlaneseq
        %v920 = vshrl.u32 %v919, 7
        %v921 = vsub.s32 1, %v920
        %v922 = vrot.slane %v842, %v921
        %v923 = vlaneseq
        %v924 = vshrl.u32 %v923, 7
        %v925 = vsub.s32 1, %v924
        %v926 = vrot.slane %v856, %v925
        %v927 = vlaneseq
        %v928 = vshrl.u32 %v927, 7
        %v929 = vsub.s32 1, %v928
        %v930 = vrot.slane %v847, %v929
        %v931 = vlaneseq
        %v932 = vshrl.u32 %v931, 7
        %v933 = vsub.s32 1, %v932
        %v934 = vrot.slane %v857, %v933
        %v935 = vsel %vm566, %v910, %v906
        %v936 = vsel %vm569, %v914, %v935
        %v937 = vsel %vm572, %v918, %v936
        %v938 = vsel %vm575, %v922, %v937
        %v939 = vsel %vm578, %v926, %v938
        %v940 = vsel %vm581, %v930, %v939
        %v941 = vsel %vm584, %v934, %v940
        %942 = vrot.lane.b32.xlu0 %v941, 64
        %v943 = vpop.permute.xlu0 %942
        %v945 = vadd.f32 %v902, %v943
        %vm946 = vcmask 1048064
        %947 = vst.msk [vmem:[#allocation2] sm:$0xff] %vm946, %v945
        %v948 = vld [vmem:[#allocation2 + $0x8] sm:$0xff]
        %v949 = vlaneseq
        %v950 = vshrl.u32 %v949, 7
        %v951 = vsub.s32 2, %v950
        %v952 = vrot.slane %v832, %v951
        %v953 = vlaneseq
        %v954 = vshrl.u32 %v953, 7
        %v955 = vsub.s32 2, %v954
        %v956 = vrot.slane %v854, %v955
        %v957 = vlaneseq
        %v958 = vshrl.u32 %v957, 7
        %v959 = vsub.s32 2, %v958
        %v960 = vrot.slane %v837, %v959
        %v961 = vlaneseq
        %v962 = vshrl.u32 %v961, 7
        %v963 = vsub.s32 2, %v962
        %v964 = vrot.slane %v855, %v963
        %v965 = vlaneseq
        %v966 = vshrl.u32 %v965, 7
        %v967 = vsub.s32 2, %v966
        %v968 = vrot.slane %v842, %v967
        %v969 = vlaneseq
        %v970 = vshrl.u32 %v969, 7
        %v971 = vsub.s32 2, %v970
        %v972 = vrot.slane %v856, %v971
        %v973 = vlaneseq
        %v974 = vshrl.u32 %v973, 7
        %v975 = vsub.s32 2, %v974
        %v976 = vrot.slane %v847, %v975
        %v977 = vlaneseq
        %v978 = vshrl.u32 %v977, 7
        %v979 = vsub.s32 2, %v978
        %v980 = vrot.slane %v857, %v979
        %v981 = vsel %vm566, %v956, %v952
        %v982 = vsel %vm569, %v960, %v981
        %v983 = vsel %vm572, %v964, %v982
        %v984 = vsel %vm575, %v968, %v983
        %v985 = vsel %vm578, %v972, %v984
        %v986 = vsel %vm581, %v976, %v985
        %v987 = vsel %vm584, %v980, %v986
        %v989 = vadd.f32 %v948, %v987
        %990 = vst.msk [vmem:[#allocation2 + $0x8] sm:$0xff] %vm900, %v989
        %v991 = vld [vmem:[#allocation2 + $0x8] sm:$0xff]
        %v992 = vlaneseq
        %v993 = vshrl.u32 %v992, 7
        %v994 = vsub.s32 3, %v993
        %v995 = vrot.slane %v832, %v994
        %v996 = vlaneseq
        %v997 = vshrl.u32 %v996, 7
        %v998 = vsub.s32 3, %v997
        %v999 = vrot.slane %v854, %v998
        %v1000 = vlaneseq
        %v1001 = vshrl.u32 %v1000, 7
        %v1002 = vsub.s32 3, %v1001
        %v1003 = vrot.slane %v837, %v1002
        %v1004 = vlaneseq
        %v1005 = vshrl.u32 %v1004, 7
        %v1006 = vsub.s32 3, %v1005
        %v1007 = vrot.slane %v855, %v1006
        %v1008 = vlaneseq
        %v1009 = vshrl.u32 %v1008, 7
        %v1010 = vsub.s32 3, %v1009
        %v1011 = vrot.slane %v842, %v1010
        %v1012 = vlaneseq
        %v1013 = vshrl.u32 %v1012, 7
        %v1014 = vsub.s32 3, %v1013
        %v1015 = vrot.slane %v856, %v1014
        %v1016 = vlaneseq
        %v1017 = vshrl.u32 %v1016, 7
        %v1018 = vsub.s32 3, %v1017
        %v1019 = vrot.slane %v847, %v1018
        %v1020 = vlaneseq
        %v1021 = vshrl.u32 %v1020, 7
        %v1022 = vsub.s32 3, %v1021
        %v1023 = vrot.slane %v857, %v1022
        %v1024 = vsel %vm566, %v999, %v995
        %v1025 = vsel %vm569, %v1003, %v1024
        %v1026 = vsel %vm572, %v1007, %v1025
        %v1027 = vsel %vm575, %v1011, %v1026
        %v1028 = vsel %vm578, %v1015, %v1027
        %v1029 = vsel %vm581, %v1019, %v1028
        %v1030 = vsel %vm584, %v1023, %v1029
        %1031 = vrot.lane.b32.xlu0 %v1030, 64
        %v1032 = vpop.permute.xlu0 %1031
        %v1034 = vadd.f32 %v991, %v1032
        %1035 = vst.msk [vmem:[#allocation2 + $0x8] sm:$0xff] %vm946, %v1034
        %v1036 = vld [vmem:[%s6] sm:$0x3f]
        %v1037 = vld [vmem:[%s411] sm:$0x3f]
        %v1038 = vld [vmem:[%s411 + $0x8] sm:$0x3f]
        %v1039 = vld [vmem:[%s411 + $0x10] sm:$0x3f]
        %v1040 = vld [vmem:[%s411 + $0x18] sm:$0x3f]
        %v1041 = vld [vmem:[%s411 + $0x20] sm:$0x3f]
        %v1042 = vld [vmem:[%s411 + $0x28] sm:$0x3f]
        %v1043 = vld [vmem:[%s411 + $0x30] sm:$0x3f]
        %v1044 = vld [vmem:[%s411 + $0x38] sm:$0x3f]
        %v1053 = vcombine.high %v1037, %v1037
        %v1055 = vunpack.c.l.s4 1983009808
        %v1056 = vunpack.c.0.s8 %v1055
        %v1057 = vlaneseq
        %v1058 = vshrl.u32 %v1057, 7
        %v1059 = vsub.s32 %v1056, %v1058
        %v1060 = vrot.slane %v1037, %v1059
        %v1062 = vunpack.c.l.s4 1983009808
        %v1063 = vunpack.c.0.s8 %v1062
        %v1064 = vlaneseq
        %v1065 = vshrl.u32 %v1064, 7
        %v1066 = vsub.s32 %v1063, %v1065
        %v1067 = vrot.slane %v1053, %v1066
        %v1068 = vcombine.high %v1060, %v1060
        %v1069 = vcombine.high %v1038, %v1038
        %v1071 = vunpack.c.l.s4 1983009808
        %v1072 = vunpack.c.0.s8 %v1071
        %v1073 = vlaneseq
        %v1074 = vshrl.u32 %v1073, 7
        %v1075 = vsub.s32 %v1072, %v1074
        %v1076 = vrot.slane %v1038, %v1075
        %v1078 = vunpack.c.l.s4 1983009808
        %v1079 = vunpack.c.0.s8 %v1078
        %v1080 = vlaneseq
        %v1081 = vshrl.u32 %v1080, 7
        %v1082 = vsub.s32 %v1079, %v1081
        %v1083 = vrot.slane %v1069, %v1082
        %v1084 = vcombine.high %v1076, %v1076
        %v1085 = vcombine.high %v1039, %v1039
        %v1087 = vunpack.c.l.s4 1983009808
        %v1088 = vunpack.c.0.s8 %v1087
        %v1089 = vlaneseq
        %v1090 = vshrl.u32 %v1089, 7
        %v1091 = vsub.s32 %v1088, %v1090
        %v1092 = vrot.slane %v1039, %v1091
        %v1094 = vunpack.c.l.s4 1983009808
        %v1095 = vunpack.c.0.s8 %v1094
        %v1096 = vlaneseq
        %v1097 = vshrl.u32 %v1096, 7
        %v1098 = vsub.s32 %v1095, %v1097
        %v1099 = vrot.slane %v1085, %v1098
        %v1100 = vcombine.high %v1092, %v1092
        %v1101 = vcombine.high %v1040, %v1040
        %v1103 = vunpack.c.l.s4 1983009808
        %v1104 = vunpack.c.0.s8 %v1103
        %v1105 = vlaneseq
        %v1106 = vshrl.u32 %v1105, 7
        %v1107 = vsub.s32 %v1104, %v1106
        %v1108 = vrot.slane %v1040, %v1107
        %v1110 = vunpack.c.l.s4 1983009808
        %v1111 = vunpack.c.0.s8 %v1110
        %v1112 = vlaneseq
        %v1113 = vshrl.u32 %v1112, 7
        %v1114 = vsub.s32 %v1111, %v1113
        %v1115 = vrot.slane %v1101, %v1114
        %v1116 = vcombine.high %v1108, %v1108
        %v1117 = vcombine.high %v1041, %v1041
        %v1119 = vunpack.c.l.s4 1983009808
        %v1120 = vunpack.c.0.s8 %v1119
        %v1121 = vlaneseq
        %v1122 = vshrl.u32 %v1121, 7
        %v1123 = vsub.s32 %v1120, %v1122
        %v1124 = vrot.slane %v1041, %v1123
        %v1126 = vunpack.c.l.s4 1983009808
        %v1127 = vunpack.c.0.s8 %v1126
        %v1128 = vlaneseq
        %v1129 = vshrl.u32 %v1128, 7
        %v1130 = vsub.s32 %v1127, %v1129
        %v1131 = vrot.slane %v1117, %v1130
        %v1132 = vcombine.high %v1124, %v1124
        %v1133 = vcombine.high %v1042, %v1042
        %v1135 = vunpack.c.l.s4 1983009808
        %v1136 = vunpack.c.0.s8 %v1135
        %v1137 = vlaneseq
        %v1138 = vshrl.u32 %v1137, 7
        %v1139 = vsub.s32 %v1136, %v1138
        %v1140 = vrot.slane %v1042, %v1139
        %v1142 = vunpack.c.l.s4 1983009808
        %v1143 = vunpack.c.0.s8 %v1142
        %v1144 = vlaneseq
        %v1145 = vshrl.u32 %v1144, 7
        %v1146 = vsub.s32 %v1143, %v1145
        %v1147 = vrot.slane %v1133, %v1146
        %v1148 = vcombine.high %v1140, %v1140
        %v1149 = vcombine.high %v1043, %v1043
        %v1151 = vunpack.c.l.s4 1983009808
        %v1152 = vunpack.c.0.s8 %v1151
        %v1153 = vlaneseq
        %v1154 = vshrl.u32 %v1153, 7
        %v1155 = vsub.s32 %v1152, %v1154
        %v1156 = vrot.slane %v1043, %v1155
        %v1158 = vunpack.c.l.s4 1983009808
        %v1159 = vunpack.c.0.s8 %v1158
        %v1160 = vlaneseq
        %v1161 = vshrl.u32 %v1160, 7
        %v1162 = vsub.s32 %v1159, %v1161
        %v1163 = vrot.slane %v1149, %v1162
        %v1164 = vcombine.high %v1156, %v1156
        %v1165 = vcombine.high %v1044, %v1044
        %v1167 = vunpack.c.l.s4 1983009808
        %v1168 = vunpack.c.0.s8 %v1167
        %v1169 = vlaneseq
        %v1170 = vshrl.u32 %v1169, 7
        %v1171 = vsub.s32 %v1168, %v1170
        %v1172 = vrot.slane %v1044, %v1171
        %v1174 = vunpack.c.l.s4 1983009808
        %v1175 = vunpack.c.0.s8 %v1174
        %v1176 = vlaneseq
        %v1177 = vshrl.u32 %v1176, 7
        %v1178 = vsub.s32 %v1175, %v1177
        %v1179 = vrot.slane %v1165, %v1178
        %v1180 = vcombine.high %v1172, %v1172
        %v1181 = vcombine.low %v1060, %v1068
        %v1182 = vcombine.low %v1067, %v1076
        %v1184 = vunpack.c.l.s4 1983009808
        %v1185 = vunpack.c.0.s8 %v1184
        %v1186 = vlaneseq
        %v1187 = vshrl.u32 %v1186, 7
        %v1188 = vsub.s32 %v1185, %v1187
        %v1189 = vrot.slane %v1181, %v1188
        %v1191 = vunpack.c.l.s4 1983009808
        %v1192 = vunpack.c.0.s8 %v1191
        %v1193 = vlaneseq
        %v1194 = vshrl.u32 %v1193, 7
        %v1195 = vsub.s32 %v1192, %v1194
        %v1196 = vrot.slane %v1182, %v1195
        %v1197 = vcombine.low %v1189, %v1196
        %v1198 = vcombine.low %v1084, %v1083
        %v1199 = vcombine.low %v1092, %v1100
        %v1201 = vunpack.c.l.s4 1983009808
        %v1202 = vunpack.c.0.s8 %v1201
        %v1203 = vlaneseq
        %v1204 = vshrl.u32 %v1203, 7
        %v1205 = vsub.s32 %v1202, %v1204
        %v1206 = vrot.slane %v1198, %v1205
        %v1208 = vunpack.c.l.s4 1983009808
        %v1209 = vunpack.c.0.s8 %v1208
        %v1210 = vlaneseq
        %v1211 = vshrl.u32 %v1210, 7
        %v1212 = vsub.s32 %v1209, %v1211
        %v1213 = vrot.slane %v1199, %v1212
        %v1214 = vcombine.low %v1206, %v1213
        %v1215 = vcombine.low %v1099, %v1108
        %v1216 = vcombine.low %v1116, %v1115
        %v1218 = vunpack.c.l.s4 1983009808
        %v1219 = vunpack.c.0.s8 %v1218
        %v1220 = vlaneseq
        %v1221 = vshrl.u32 %v1220, 7
        %v1222 = vsub.s32 %v1219, %v1221
        %v1223 = vrot.slane %v1215, %v1222
        %v1225 = vunpack.c.l.s4 1983009808
        %v1226 = vunpack.c.0.s8 %v1225
        %v1227 = vlaneseq
        %v1228 = vshrl.u32 %v1227, 7
        %v1229 = vsub.s32 %v1226, %v1228
        %v1230 = vrot.slane %v1216, %v1229
        %v1231 = vcombine.low %v1223, %v1230
        %v1232 = vcombine.low %v1124, %v1132
        %v1233 = vcombine.low %v1131, %v1140
        %v1235 = vunpack.c.l.s4 1983009808
        %v1236 = vunpack.c.0.s8 %v1235
        %v1237 = vlaneseq
        %v1238 = vshrl.u32 %v1237, 7
        %v1239 = vsub.s32 %v1236, %v1238
        %v1240 = vrot.slane %v1232, %v1239
        %v1242 = vunpack.c.l.s4 1983009808
        %v1243 = vunpack.c.0.s8 %v1242
        %v1244 = vlaneseq
        %v1245 = vshrl.u32 %v1244, 7
        %v1246 = vsub.s32 %v1243, %v1245
        %v1247 = vrot.slane %v1233, %v1246
        %v1248 = vcombine.low %v1240, %v1247
        %v1249 = vcombine.low %v1148, %v1147
        %v1250 = vcombine.low %v1156, %v1164
        %v1252 = vunpack.c.l.s4 1983009808
        %v1253 = vunpack.c.0.s8 %v1252
        %v1254 = vlaneseq
        %v1255 = vshrl.u32 %v1254, 7
        %v1256 = vsub.s32 %v1253, %v1255
        %v1257 = vrot.slane %v1249, %v1256
        %v1259 = vunpack.c.l.s4 1983009808
        %v1260 = vunpack.c.0.s8 %v1259
        %v1261 = vlaneseq
        %v1262 = vshrl.u32 %v1261, 7
        %v1263 = vsub.s32 %v1260, %v1262
        %v1264 = vrot.slane %v1250, %v1263
        %v1265 = vcombine.low %v1257, %v1264
        %v1266 = vcombine.low %v1163, %v1172
        %v1267 = vcombine.low %v1180, %v1179
        %v1269 = vunpack.c.l.s4 1983009808
        %v1270 = vunpack.c.0.s8 %v1269
        %v1271 = vlaneseq
        %v1272 = vshrl.u32 %v1271, 7
        %v1273 = vsub.s32 %v1270, %v1272
        %v1274 = vrot.slane %v1266, %v1273
        %v1276 = vunpack.c.l.s4 1983009808
        %v1277 = vunpack.c.0.s8 %v1276
        %v1278 = vlaneseq
        %v1279 = vshrl.u32 %v1278, 7
        %v1280 = vsub.s32 %v1277, %v1279
        %v1281 = vrot.slane %v1267, %v1280
        %v1282 = vcombine.low %v1274, %v1281
        %vm1283 = vcmask 48128
        %v1284 = vsel %vm1283, %v1197, 0
        %v1286 = vsel %vm1283, %v1214, 0
        %v1288 = vsel %vm1283, %v1231, 0
        %v1290 = vsel %vm1283, %v1248, 0
        %v1292 = vsel %vm1283, %v1265, 0
        %v1294 = vsel %vm1283, %v1282, 0
        %vm1296 = vcmask 1045504
        %v1298 = vsel %vm1296, %v1036, 0
        %1300 = vmatprep.subr.mxu0 0.0
        %1301 = vmatpush1.msra.mxu0 %v1298
        %1302 = vmatprep.subr.mxu0 0.0
        %1303 = vmatpush1.msra.mxu0 0.0
        %1304 = vmatprep.subr.mxu0 0.0
        %1305 = vmatpush1.msra.mxu0 0.0
        %1306 = vmatprep.subr.mxu0 0.0
        %1307 = vmatpush1.msra.mxu0 0.0
        %1308 = vmatprep.subr.mxu0 0.0
        %1309 = vmatpush1.msra.mxu0 0.0
        %1310 = vmatprep.subr.mxu0 0.0
        %1311 = vmatpush1.msra.mxu0 0.0
        %1312 = vmatprep.subr.mxu0 0.0
        %1313 = vmatpush1.msra.mxu0 0.0
        %1314 = vmatprep.subr.mxu0 0.0
        %1315 = vmatpush1.msra.mxu0 0.0
        %1316 = vmatprep.subr.mxu0 0.0
        %1317 = vmatpush1.msra.mxu0 0.0
        %1318 = vmatprep.subr.mxu0 0.0
        %1319 = vmatpush1.msra.mxu0 0.0
        %1320 = vmatprep.subr.mxu0 0.0
        %1321 = vmatpush1.msra.mxu0 0.0
        %1322 = vmatprep.subr.mxu0 0.0
        %1323 = vmatpush1.msra.mxu0 0.0
        %1324 = vmatprep.subr.mxu0 0.0
        %1325 = vmatpush1.msra.mxu0 0.0
        %1326 = vmatprep.subr.mxu0 0.0
        %1327 = vmatpush1.msra.mxu0 0.0
        %1328 = vmatprep.subr.mxu0 0.0
        %1329 = vmatpush1.msra.mxu0 0.0
        %1330 = vmatprep.subr.mxu0 0.0
        %1331 = vmatpush1.msra.mxu0 0.0
        %1332 = vmatprep.subr.mxu0 0.0
        %1333 = vmatpush1.msra.mxu0 0.0
        %1334 = vmatprep.subr.mxu0 0.0
        %1335 = vmatpush1.msra.mxu0 0.0
        %1336 = vmatprep.subr.mxu0 0.0
        %1337 = vmatpush1.msra.mxu0 0.0
        %1338 = vmatprep.subr.mxu0 0.0
        %1339 = vmatpush1.msra.mxu0 0.0
        %1340 = vmatprep.subr.mxu0 0.0
        %1341 = vmatpush1.msra.mxu0 0.0
        %1342 = vmatprep.subr.mxu0 0.0
        %1343 = vmatpush1.msra.mxu0 0.0
        %1344 = vmatprep.subr.mxu0 0.0
        %1345 = vmatpush1.msra.mxu0 0.0
        %1346 = vmatprep.subr.mxu0 0.0
        %1347 = vmatpush1.msra.mxu0 0.0
        %1348 = vmatprep.subr.mxu0 0.0
        %1349 = vmatpush1.msra.mxu0 0.0
        %1350 = vmatprep.subr.mxu0 0.0
        %1351 = vmatpush1.msra.mxu0 0.0
        %1352 = vmatprep.subr.mxu0 0.0
        %1353 = vmatpush1.msra.mxu0 0.0
        %1354 = vmatprep.subr.mxu0 0.0
        %1355 = vmatpush1.msra.mxu0 0.0
        %1356 = vmatprep.subr.mxu0 0.0
        %1357 = vmatpush1.msra.mxu0 0.0
        %1358 = vmatprep.subr.mxu0 0.0
        %1359 = vmatpush1.msra.mxu0 0.0
        %1360 = vmatprep.subr.mxu0 0.0
        %1361 = vmatpush1.msra.mxu0 0.0
        %1362 = vmatprep.subr.mxu0 0.0
        %1363 = vmatpush1.msra.mxu0 0.0
        %1364 = vmatprep.mubr.f32.mxu0 0.0
        %1365 = vmatmul.mubr.f32.gmra.mrb[0].mxu0 %v1284
        %v1366 = vpop.f32.mrb[0].mxu0
        %v1367 = vadd.f32 0.0, %v1366
        %v1368 = vpop.f32.mrb[0].mxu0
        %1369 = vmatprep.mubr.f32.mxu0 0.0
        %1370 = vmatmul.mubr.f32.gmra.mrb[0].mxu0 %v1286
        %v1371 = vpop.f32.mrb[0].mxu0
        %v1372 = vadd.f32 0.0, %v1371
        %v1373 = vpop.f32.mrb[0].mxu0
        %1374 = vmatprep.mubr.f32.mxu0 0.0
        %1375 = vmatmul.mubr.f32.gmra.mrb[0].mxu0 %v1288
        %v1376 = vpop.f32.mrb[0].mxu0
        %v1377 = vadd.f32 0.0, %v1376
        %v1378 = vpop.f32.mrb[0].mxu0
        %1379 = vmatprep.mubr.f32.mxu0 0.0
        %1380 = vmatmul.mubr.f32.gmra.mrb[0].mxu0 %v1290
        %v1381 = vpop.f32.mrb[0].mxu0
        %v1382 = vadd.f32 0.0, %v1381
        %v1383 = vpop.f32.mrb[0].mxu0
        %1384 = vmatprep.mubr.f32.mxu0 0.0
        %1385 = vmatmul.mubr.f32.gmra.mrb[0].mxu0 %v1292
        %v1386 = vpop.f32.mrb[0].mxu0
        %v1387 = vadd.f32 0.0, %v1386
        %v1388 = vpop.f32.mrb[0].mxu0
        %1389 = vmatprep.mubr.f32.mxu0 0.0
        %1390 = vmatmul.mubr.f32.gmra.mrb[0].mxu0 %v1294
        %v1391 = vpop.f32.mrb[0].mxu0
        %v1392 = vadd.f32 0.0, %v1391
        %v1393 = vpop.f32.mrb[0].mxu0
        %1394 = vdwg.mxu0
        %v1401 = vcombine.high %v1367, %v1367
        %v1403 = vunpack.c.l.s4 1983009808
        %v1404 = vunpack.c.0.s8 %v1403
        %v1405 = vlaneseq
        %v1406 = vshrl.u32 %v1405, 7
        %v1407 = vsub.s32 %v1404, %v1406
        %v1408 = vrot.slane %v1367, %v1407
        %v1410 = vunpack.c.l.s4 1983009808
        %v1411 = vunpack.c.0.s8 %v1410
        %v1412 = vlaneseq
        %v1413 = vshrl.u32 %v1412, 7
        %v1414 = vsub.s32 %v1411, %v1413
        %v1415 = vrot.slane %v1401, %v1414
        %v1416 = vcombine.high %v1408, %v1408
        %v1417 = vcombine.high %v1415, %v1415
        %v1418 = vcombine.high %v1372, %v1372
        %v1420 = vunpack.c.l.s4 1983009808
        %v1421 = vunpack.c.0.s8 %v1420
        %v1422 = vlaneseq
        %v1423 = vshrl.u32 %v1422, 7
        %v1424 = vsub.s32 %v1421, %v1423
        %v1425 = vrot.slane %v1372, %v1424
        %v1427 = vunpack.c.l.s4 1983009808
        %v1428 = vunpack.c.0.s8 %v1427
        %v1429 = vlaneseq
        %v1430 = vshrl.u32 %v1429, 7
        %v1431 = vsub.s32 %v1428, %v1430
        %v1432 = vrot.slane %v1418, %v1431
        %v1433 = vcombine.high %v1425, %v1425
        %v1434 = vcombine.high %v1432, %v1432
        %v1435 = vcombine.high %v1377, %v1377
        %v1437 = vunpack.c.l.s4 1983009808
        %v1438 = vunpack.c.0.s8 %v1437
        %v1439 = vlaneseq
        %v1440 = vshrl.u32 %v1439, 7
        %v1441 = vsub.s32 %v1438, %v1440
        %v1442 = vrot.slane %v1377, %v1441
        %v1444 = vunpack.c.l.s4 1983009808
        %v1445 = vunpack.c.0.s8 %v1444
        %v1446 = vlaneseq
        %v1447 = vshrl.u32 %v1446, 7
        %v1448 = vsub.s32 %v1445, %v1447
        %v1449 = vrot.slane %v1435, %v1448
        %v1450 = vcombine.high %v1442, %v1442
        %v1451 = vcombine.high %v1449, %v1449
        %v1452 = vcombine.high %v1382, %v1382
        %v1454 = vunpack.c.l.s4 1983009808
        %v1455 = vunpack.c.0.s8 %v1454
        %v1456 = vlaneseq
        %v1457 = vshrl.u32 %v1456, 7
        %v1458 = vsub.s32 %v1455, %v1457
        %v1459 = vrot.slane %v1382, %v1458
        %v1461 = vunpack.c.l.s4 1983009808
        %v1462 = vunpack.c.0.s8 %v1461
        %v1463 = vlaneseq
        %v1464 = vshrl.u32 %v1463, 7
        %v1465 = vsub.s32 %v1462, %v1464
        %v1466 = vrot.slane %v1452, %v1465
        %v1467 = vcombine.high %v1459, %v1459
        %v1468 = vcombine.high %v1466, %v1466
        %v1469 = vcombine.high %v1387, %v1387
        %v1471 = vunpack.c.l.s4 1983009808
        %v1472 = vunpack.c.0.s8 %v1471
        %v1473 = vlaneseq
        %v1474 = vshrl.u32 %v1473, 7
        %v1475 = vsub.s32 %v1472, %v1474
        %v1476 = vrot.slane %v1387, %v1475
        %v1478 = vunpack.c.l.s4 1983009808
        %v1479 = vunpack.c.0.s8 %v1478
        %v1480 = vlaneseq
        %v1481 = vshrl.u32 %v1480, 7
        %v1482 = vsub.s32 %v1479, %v1481
        %v1483 = vrot.slane %v1469, %v1482
        %v1484 = vcombine.high %v1476, %v1476
        %v1485 = vcombine.high %v1483, %v1483
        %v1486 = vcombine.high %v1392, %v1392
        %v1488 = vunpack.c.l.s4 1983009808
        %v1489 = vunpack.c.0.s8 %v1488
        %v1490 = vlaneseq
        %v1491 = vshrl.u32 %v1490, 7
        %v1492 = vsub.s32 %v1489, %v1491
        %v1493 = vrot.slane %v1392, %v1492
        %v1495 = vunpack.c.l.s4 1983009808
        %v1496 = vunpack.c.0.s8 %v1495
        %v1497 = vlaneseq
        %v1498 = vshrl.u32 %v1497, 7
        %v1499 = vsub.s32 %v1496, %v1498
        %v1500 = vrot.slane %v1486, %v1499
        %v1501 = vcombine.high %v1493, %v1493
        %v1502 = vcombine.high %v1500, %v1500
        %v1503 = vld [vmem:[#allocation2] sm:$0xff]
        %v1504 = vlaneseq
        %v1505 = vshrl.u32 %v1504, 7
        %v1506 = vsub.s32 0, %v1505
        %v1507 = vrot.slane %v1408, %v1506
        %v1508 = vlaneseq
        %v1509 = vshrl.u32 %v1508, 7
        %v1510 = vsub.s32 0, %v1509
        %v1511 = vrot.slane %v1417, %v1510
        %v1512 = vlaneseq
        %v1513 = vshrl.u32 %v1512, 7
        %v1514 = vsub.s32 0, %v1513
        %v1515 = vrot.slane %v1432, %v1514
        %v1516 = vlaneseq
        %v1517 = vshrl.u32 %v1516, 7
        %v1518 = vsub.s32 0, %v1517
        %v1519 = vrot.slane %v1450, %v1518
        %v1520 = vlaneseq
        %v1521 = vshrl.u32 %v1520, 7
        %v1522 = vsub.s32 0, %v1521
        %v1523 = vrot.slane %v1459, %v1522
        %v1524 = vlaneseq
        %v1525 = vshrl.u32 %v1524, 7
        %v1526 = vsub.s32 0, %v1525
        %v1527 = vrot.slane %v1468, %v1526
        %v1528 = vlaneseq
        %v1529 = vshrl.u32 %v1528, 7
        %v1530 = vsub.s32 0, %v1529
        %v1531 = vrot.slane %v1483, %v1530
        %v1532 = vlaneseq
        %v1533 = vshrl.u32 %v1532, 7
        %v1534 = vsub.s32 0, %v1533
        %v1535 = vrot.slane %v1501, %v1534
        %v1536 = vsel %vm566, %v1511, %v1507
        %v1537 = vsel %vm569, %v1515, %v1536
        %v1538 = vsel %vm572, %v1519, %v1537
        %v1539 = vsel %vm575, %v1523, %v1538
        %v1540 = vsel %vm578, %v1527, %v1539
        %v1541 = vsel %vm581, %v1531, %v1540
        %v1542 = vsel %vm584, %v1535, %v1541
        %v1544 = vadd.f32 %v1503, %v1542
        %vm1545 = vcmask 130048
        %1546 = vst.msk [vmem:[#allocation2] sm:$0xff] %vm1545, %v1544
        %v1547 = vld [vmem:[#allocation2] sm:$0xff]
        %1548 = vrot.lane.b32.xlu0 %v1542, 16
        %v1549 = vpop.permute.xlu0 %1548
        %v1551 = vadd.f32 %v1547, %v1549
        %vm1552 = vcmask 261248
        %1553 = vst.msk [vmem:[#allocation2] sm:$0xff] %vm1552, %v1551
        %v1554 = vld [vmem:[#allocation2] sm:$0xff]
        %1555 = vrot.lane.b32.xlu0 %v1542, 32
        %v1556 = vpop.permute.xlu0 %1555
        %v1558 = vadd.f32 %v1554, %v1556
        %vm1559 = vcmask 392448
        %1560 = vst.msk [vmem:[#allocation2] sm:$0xff] %vm1559, %v1558
        %v1561 = vld [vmem:[#allocation2] sm:$0xff]
        %v1562 = vlaneseq
        %v1563 = vshrl.u32 %v1562, 7
        %v1564 = vsub.s32 1, %v1563
        %v1565 = vrot.slane %v1408, %v1564
        %v1566 = vlaneseq
        %v1567 = vshrl.u32 %v1566, 7
        %v1568 = vsub.s32 1, %v1567
        %v1569 = vrot.slane %v1417, %v1568
        %v1570 = vlaneseq
        %v1571 = vshrl.u32 %v1570, 7
        %v1572 = vsub.s32 1, %v1571
        %v1573 = vrot.slane %v1432, %v1572
        %v1574 = vlaneseq
        %v1575 = vshrl.u32 %v1574, 7
        %v1576 = vsub.s32 1, %v1575
        %v1577 = vrot.slane %v1450, %v1576
        %v1578 = vlaneseq
        %v1579 = vshrl.u32 %v1578, 7
        %v1580 = vsub.s32 1, %v1579
        %v1581 = vrot.slane %v1459, %v1580
        %v1582 = vlaneseq
        %v1583 = vshrl.u32 %v1582, 7
        %v1584 = vsub.s32 1, %v1583
        %v1585 = vrot.slane %v1468, %v1584
        %v1586 = vlaneseq
        %v1587 = vshrl.u32 %v1586, 7
        %v1588 = vsub.s32 1, %v1587
        %v1589 = vrot.slane %v1483, %v1588
        %v1590 = vlaneseq
        %v1591 = vshrl.u32 %v1590, 7
        %v1592 = vsub.s32 1, %v1591
        %v1593 = vrot.slane %v1501, %v1592
        %v1594 = vsel %vm566, %v1569, %v1565
        %v1595 = vsel %vm569, %v1573, %v1594
        %v1596 = vsel %vm572, %v1577, %v1595
        %v1597 = vsel %vm575, %v1581, %v1596
        %v1598 = vsel %vm578, %v1585, %v1597
        %v1599 = vsel %vm581, %v1589, %v1598
        %v1600 = vsel %vm584, %v1593, %v1599
        %1601 = vrot.lane.b32.xlu0 %v1600, 48
        %v1602 = vpop.permute.xlu0 %1601
        %v1604 = vadd.f32 %v1561, %v1602
        %vm1605 = vcmask 523648
        %1606 = vst.msk [vmem:[#allocation2] sm:$0xff] %vm1605, %v1604
        %v1607 = vld [vmem:[#allocation2] sm:$0xff]
        %1608 = vrot.lane.b32.xlu0 %v1600, 64
        %v1609 = vpop.permute.xlu0 %1608
        %v1611 = vadd.f32 %v1607, %v1609
        %vm1612 = vcmask 654848
        %1613 = vst.msk [vmem:[#allocation2] sm:$0xff] %vm1612, %v1611
        %v1614 = vld [vmem:[#allocation2] sm:$0xff]
        %1615 = vrot.lane.b32.xlu0 %v1600, 80
        %v1616 = vpop.permute.xlu0 %1615
        %v1618 = vadd.f32 %v1614, %v1616
        %vm1619 = vcmask 786048
        %1620 = vst.msk [vmem:[#allocation2] sm:$0xff] %vm1619, %v1618
        %v1621 = vld [vmem:[#allocation2] sm:$0xff]
        %v1622 = vlaneseq
        %v1623 = vshrl.u32 %v1622, 7
        %v1624 = vsub.s32 0, %v1623
        %v1625 = vrot.slane %v1416, %v1624
        %v1626 = vlaneseq
        %v1627 = vshrl.u32 %v1626, 7
        %v1628 = vsub.s32 0, %v1627
        %v1629 = vrot.slane %v1425, %v1628
        %v1630 = vlaneseq
        %v1631 = vshrl.u32 %v1630, 7
        %v1632 = vsub.s32 0, %v1631
        %v1633 = vrot.slane %v1434, %v1632
        %v1634 = vlaneseq
        %v1635 = vshrl.u32 %v1634, 7
        %v1636 = vsub.s32 0, %v1635
        %v1637 = vrot.slane %v1449, %v1636
        %v1638 = vlaneseq
        %v1639 = vshrl.u32 %v1638, 7
        %v1640 = vsub.s32 0, %v1639
        %v1641 = vrot.slane %v1467, %v1640
        %v1642 = vlaneseq
        %v1643 = vshrl.u32 %v1642, 7
        %v1644 = vsub.s32 0, %v1643
        %v1645 = vrot.slane %v1476, %v1644
        %v1646 = vlaneseq
        %v1647 = vshrl.u32 %v1646, 7
        %v1648 = vsub.s32 0, %v1647
        %v1649 = vrot.slane %v1485, %v1648
        %v1650 = vlaneseq
        %v1651 = vshrl.u32 %v1650, 7
        %v1652 = vsub.s32 0, %v1651
        %v1653 = vrot.slane %v1500, %v1652
        %v1654 = vsel %vm566, %v1629, %v1625
        %v1655 = vsel %vm569, %v1633, %v1654
        %v1656 = vsel %vm572, %v1637, %v1655
        %v1657 = vsel %vm575, %v1641, %v1656
        %v1658 = vsel %vm578, %v1645, %v1657
        %v1659 = vsel %vm581, %v1649, %v1658
        %v1660 = vsel %vm584, %v1653, %v1659
        %1661 = vrot.lane.b32.xlu0 %v1660, 96
        %v1662 = vpop.permute.xlu0 %1661
        %v1664 = vadd.f32 %v1621, %v1662
        %vm1665 = vcmask 917248
        %1666 = vst.msk [vmem:[#allocation2] sm:$0xff] %vm1665, %v1664
        %v1667 = vld [vmem:[#allocation2] sm:$0xff]
        %1668 = vrot.lane.b32.xlu0 %v1660, 112
        %v1669 = vpop.permute.xlu0 %1668
        %v1671 = vadd.f32 %v1667, %v1669
        %vm1672 = vcmask 1048448
        %1673 = vst.msk [vmem:[#allocation2] sm:$0xff] %vm1672, %v1671
        %v1674 = vld [vmem:[#allocation2 + $0x8] sm:$0xff]
        %v1675 = vlaneseq
        %v1676 = vshrl.u32 %v1675, 7
        %v1677 = vsub.s32 1, %v1676
        %v1678 = vrot.slane %v1416, %v1677
        %v1679 = vlaneseq
        %v1680 = vshrl.u32 %v1679, 7
        %v1681 = vsub.s32 1, %v1680
        %v1682 = vrot.slane %v1425, %v1681
        %v1683 = vlaneseq
        %v1684 = vshrl.u32 %v1683, 7
        %v1685 = vsub.s32 1, %v1684
        %v1686 = vrot.slane %v1434, %v1685
        %v1687 = vlaneseq
        %v1688 = vshrl.u32 %v1687, 7
        %v1689 = vsub.s32 1, %v1688
        %v1690 = vrot.slane %v1449, %v1689
        %v1691 = vlaneseq
        %v1692 = vshrl.u32 %v1691, 7
        %v1693 = vsub.s32 1, %v1692
        %v1694 = vrot.slane %v1467, %v1693
        %v1695 = vlaneseq
        %v1696 = vshrl.u32 %v1695, 7
        %v1697 = vsub.s32 1, %v1696
        %v1698 = vrot.slane %v1476, %v1697
        %v1699 = vlaneseq
        %v1700 = vshrl.u32 %v1699, 7
        %v1701 = vsub.s32 1, %v1700
        %v1702 = vrot.slane %v1485, %v1701
        %v1703 = vlaneseq
        %v1704 = vshrl.u32 %v1703, 7
        %v1705 = vsub.s32 1, %v1704
        %v1706 = vrot.slane %v1500, %v1705
        %v1707 = vsel %vm566, %v1682, %v1678
        %v1708 = vsel %vm569, %v1686, %v1707
        %v1709 = vsel %vm572, %v1690, %v1708
        %v1710 = vsel %vm575, %v1694, %v1709
        %v1711 = vsel %vm578, %v1698, %v1710
        %v1712 = vsel %vm581, %v1702, %v1711
        %v1713 = vsel %vm584, %v1706, %v1712
        %v1715 = vadd.f32 %v1674, %v1713
        %1716 = vst.msk [vmem:[#allocation2 + $0x8] sm:$0xff] %vm1545, %v1715
        %v1717 = vld [vmem:[#allocation2 + $0x8] sm:$0xff]
        %1718 = vrot.lane.b32.xlu0 %v1713, 16
        %v1719 = vpop.permute.xlu0 %1718
        %v1721 = vadd.f32 %v1717, %v1719
        %1722 = vst.msk [vmem:[#allocation2 + $0x8] sm:$0xff] %vm1552, %v1721
        %v1723 = vld [vmem:[#allocation2 + $0x8] sm:$0xff]
        %1724 = vrot.lane.b32.xlu0 %v1713, 32
        %v1725 = vpop.permute.xlu0 %1724
        %v1727 = vadd.f32 %v1723, %v1725
        %1728 = vst.msk [vmem:[#allocation2 + $0x8] sm:$0xff] %vm1559, %v1727
        %v1729 = vld [vmem:[#allocation2 + $0x8] sm:$0xff]
        %v1730 = vlaneseq
        %v1731 = vshrl.u32 %v1730, 7
        %v1732 = vsub.s32 0, %v1731
        %v1733 = vrot.slane %v1415, %v1732
        %v1734 = vlaneseq
        %v1735 = vshrl.u32 %v1734, 7
        %v1736 = vsub.s32 0, %v1735
        %v1737 = vrot.slane %v1433, %v1736
        %v1738 = vlaneseq
        %v1739 = vshrl.u32 %v1738, 7
        %v1740 = vsub.s32 0, %v1739
        %v1741 = vrot.slane %v1442, %v1740
        %v1742 = vlaneseq
        %v1743 = vshrl.u32 %v1742, 7
        %v1744 = vsub.s32 0, %v1743
        %v1745 = vrot.slane %v1451, %v1744
        %v1746 = vlaneseq
        %v1747 = vshrl.u32 %v1746, 7
        %v1748 = vsub.s32 0, %v1747
        %v1749 = vrot.slane %v1466, %v1748
        %v1750 = vlaneseq
        %v1751 = vshrl.u32 %v1750, 7
        %v1752 = vsub.s32 0, %v1751
        %v1753 = vrot.slane %v1484, %v1752
        %v1754 = vlaneseq
        %v1755 = vshrl.u32 %v1754, 7
        %v1756 = vsub.s32 0, %v1755
        %v1757 = vrot.slane %v1493, %v1756
        %v1758 = vlaneseq
        %v1759 = vshrl.u32 %v1758, 7
        %v1760 = vsub.s32 0, %v1759
        %v1761 = vrot.slane %v1502, %v1760
        %v1762 = vsel %vm566, %v1737, %v1733
        %v1763 = vsel %vm569, %v1741, %v1762
        %v1764 = vsel %vm572, %v1745, %v1763
        %v1765 = vsel %vm575, %v1749, %v1764
        %v1766 = vsel %vm578, %v1753, %v1765
        %v1767 = vsel %vm581, %v1757, %v1766
        %v1768 = vsel %vm584, %v1761, %v1767
        %1769 = vrot.lane.b32.xlu0 %v1768, 48
        %v1770 = vpop.permute.xlu0 %1769
        %v1772 = vadd.f32 %v1729, %v1770
        %1773 = vst.msk [vmem:[#allocation2 + $0x8] sm:$0xff] %vm1605, %v1772
        %v1774 = vld [vmem:[#allocation2 + $0x8] sm:$0xff]
        %1775 = vrot.lane.b32.xlu0 %v1768, 64
        %v1776 = vpop.permute.xlu0 %1775
        %v1778 = vadd.f32 %v1774, %v1776
        %1779 = vst.msk [vmem:[#allocation2 + $0x8] sm:$0xff] %vm1612, %v1778
        %v1780 = vld [vmem:[#allocation2 + $0x8] sm:$0xff]
        %1781 = vrot.lane.b32.xlu0 %v1768, 80
        %v1782 = vpop.permute.xlu0 %1781
        %v1784 = vadd.f32 %v1780, %v1782
        %1785 = vst.msk [vmem:[#allocation2 + $0x8] sm:$0xff] %vm1619, %v1784
        %v1786 = vld [vmem:[#allocation2 + $0x8] sm:$0xff]
        %v1787 = vlaneseq
        %v1788 = vshrl.u32 %v1787, 7
        %v1789 = vsub.s32 1, %v1788
        %v1790 = vrot.slane %v1415, %v1789
        %v1791 = vlaneseq
        %v1792 = vshrl.u32 %v1791, 7
        %v1793 = vsub.s32 1, %v1792
        %v1794 = vrot.slane %v1433, %v1793
        %v1795 = vlaneseq
        %v1796 = vshrl.u32 %v1795, 7
        %v1797 = vsub.s32 1, %v1796
        %v1798 = vrot.slane %v1442, %v1797
        %v1799 = vlaneseq
        %v1800 = vshrl.u32 %v1799, 7
        %v1801 = vsub.s32 1, %v1800
        %v1802 = vrot.slane %v1451, %v1801
        %v1803 = vlaneseq
        %v1804 = vshrl.u32 %v1803, 7
        %v1805 = vsub.s32 1, %v1804
        %v1806 = vrot.slane %v1466, %v1805
        %v1807 = vlaneseq
        %v1808 = vshrl.u32 %v1807, 7
        %v1809 = vsub.s32 1, %v1808
        %v1810 = vrot.slane %v1484, %v1809
        %v1811 = vlaneseq
        %v1812 = vshrl.u32 %v1811, 7
        %v1813 = vsub.s32 1, %v1812
        %v1814 = vrot.slane %v1493, %v1813
        %v1815 = vlaneseq
        %v1816 = vshrl.u32 %v1815, 7
        %v1817 = vsub.s32 1, %v1816
        %v1818 = vrot.slane %v1502, %v1817
        %v1819 = vsel %vm566, %v1794, %v1790
        %v1820 = vsel %vm569, %v1798, %v1819
        %v1821 = vsel %vm572, %v1802, %v1820
        %v1822 = vsel %vm575, %v1806, %v1821
        %v1823 = vsel %vm578, %v1810, %v1822
        %v1824 = vsel %vm581, %v1814, %v1823
        %v1825 = vsel %vm584, %v1818, %v1824
        %1826 = vrot.lane.b32.xlu0 %v1825, 96
        %v1827 = vpop.permute.xlu0 %1826
        %v1829 = vadd.f32 %v1786, %v1827
        %1830 = vst.msk [vmem:[#allocation2 + $0x8] sm:$0xff] %vm1665, %v1829
        %v1831 = vld [vmem:[#allocation2 + $0x8] sm:$0xff]
        %1832 = vrot.lane.b32.xlu0 %v1825, 112
        %v1833 = vpop.permute.xlu0 %1832
        %v1835 = vadd.f32 %v1831, %v1833
        %1836 = vst.msk [vmem:[#allocation2 + $0x8] sm:$0xff] %vm1672, %v1835
        %v1837 = vld [vmem:[#allocation2] sm:$0xff]
        %v1838 = vld [vmem:[#allocation2 + $0x8] sm:$0xff]
        %1839 = vst [vmem:[%s373] sm:$0xff] %v1837
        %1840 = vst [vmem:[%s373 + $0x8] sm:$0xff] %v1838
        %s1841 = sand.u32 %s218, 1
        %s1842 = scalar_lea.sflag [#allocation4], %s1841
        %s1843 = sand.u32 %s218, 1
        %s1844 = smul.addr %s1843, 16
        %s1845 = scalar_lea.vmem [#allocation3], %s1844
        // Predicated region
        $region49: #{tpu_custom_call.1} parent=47 // pred_check
          %p1846 = pneg %p228
        $region50: #{tpu_custom_call.1} parent=47 // pred_check_branch
          %1848 = sbr.rel (%p1846) target = $region52
        $region51: #{tpu_custom_call.1} parent=47 // pred_region
          %s1850 = ssub.s32 256, 256
          %1851 = vsyncadd %s1842, %s1850
          %s1852 = smul.addr %s26, 2
          %s1853 = smul.addr %s25, 2
          %s1854 = sadd.s32 %s1852, %s1853
          %s1855 = smul.addr %s1854, 128
          %s1856 = scalar_lea.hbm %s7, %s1855
          %s1858 = sshll.u32 %s1845, 4
          %s1859 = int_to_ptr.vmem [resolvable:$true] %s1858
          %1861 = dma.vmem_to_hbm [thread:$0]  %s1859, 256, %s1856, %s1842
        $region52: #{tpu_custom_call.1} parent=47 // pred_fallthru
          _
      $region48: #{tpu_custom_call.1} parent=5 // pred_fallthru
        _
      %p1862 = scmp.le.s32.totalorder 2, %s16
      // Predicated region
      $region53: #{tpu_custom_call.1} parent=5 // pred_check
        %p1863 = pneg %p1862
      $region54: #{tpu_custom_call.1} parent=5 // pred_check_branch
        %1865 = sbr.rel (%p1863) target = $region56
      $region55: #{tpu_custom_call.1} parent=5 // pred_region
        %s1866 = ssub.s32 %s16, 2
        // Predicated region
        $region57: #{tpu_custom_call.1} parent=55 // pred_check
          %p1867 = pneg %p234
        $region58: #{tpu_custom_call.1} parent=55 // pred_check_branch
          %1869 = sbr.rel (%p1867) target = $region60
        $region59: #{tpu_custom_call.1} parent=55 // pred_region
          %s1870 = sand.u32 %s219, 1
          %s1871 = scalar_lea.sflag [#allocation4], %s1870
          %s1872 = sand.u32 %s219, 1
          %s1873 = smul.addr %s1872, 16
          %s1874 = scalar_lea.vmem [#allocation3], %s1873
          %1875 = dma.done %s1871, 256
        $region60: #{tpu_custom_call.1} parent=55 // pred_fallthru
          _
      $region56: #{tpu_custom_call.1} parent=5 // pred_fallthru
        _
    $region6: #{tpu_custom_call.1} parent=1 // loop_footer
      %s20 = sadd.s32 1, %s16
    $region7: #{tpu_custom_call.1} parent=1 // loop_footer_branch
      %15 = sbr.rel target = $region3
    $region8: #{tpu_custom_call.1} parent=1 // loop_exit
      _
    %1876 = vsyncpa [#allocation4], 1
    %s1877 = scalar_lea.sflag [#allocation4], 1
    %1878 = vsyncpa %s1877, 1

</llo_original>
